<compile_context>
chip_gen: v7x
topology: tpu7x:2x2x1
jax: 0.10.0
libtpu: 0.0.40
codegen_flags: <defaults>
</compile_context>

<pallas_src>
import jax
import jax.numpy as jnp
from jax.experimental import pallas as pl
from jax.experimental.pallas import tpu as pltpu

# head output widths, in the order returned by forward(): (exp, aro, val, au)
HEADS = (("exp", 8), ("aro", 1), ("val", 1), ("au", 12))
N_HEADS = len(HEADS)
OUT_SLOT = 32                     # lanes reserved per head in the packed output
OUT_PACKED = OUT_SLOT * N_HEADS   # 128 -> one lane-dense output tile


def _round_up(n, m):
    return ((n + m - 1) // m) * m


def _mtl_mlp_kernel(x_ref, w1_ref, b1_ref, w2_ref, b2_ref, o_ref):
    """x:[TB,D] f32; w1:[D,4H] bf16; b1:[1,4H] f32; w2:[4,H,32] bf16;
    b2:[1,128] f32; o:[TB,128] f32."""
    H = w1_ref.shape[1] // N_HEADS

    # Fused first layer for all four heads: one [TB,D] x [D,4H] MXU pass.
    x = x_ref[...].astype(jnp.bfloat16)
    h = jnp.dot(x, w1_ref[...], preferred_element_type=jnp.float32)
    h = jnp.maximum(h + b1_ref[...], 0.0)       # bias + ReLU in f32 (VPU-native)
    hb = h.astype(jnp.bfloat16)                 # single cast, hoisted out of loop

    # Per-head second layer; H is a multiple of 128 (asserted in pack_params) so
    # the hb slices stay lane-tile aligned.  Results are concatenated in registers
    # into one lane-dense [TB, 128] value -> one bias add, one unmasked store.
    outs = []
    for k in range(N_HEADS):
        outs.append(jnp.dot(hb[:, k * H:(k + 1) * H], w2_ref[k],
                            preferred_element_type=jnp.float32))
    o = jnp.concatenate(outs, axis=1)           # [TB, 128]
    o_ref[...] = o + b2_ref[...]


def init_params(key, in_features):
    """Deterministic synthetic f32 parameters with the torch module's shapes
    (weights stored [in, out], i.e. transposed vs. nn.Linear.weight)."""
    hidden = in_features // 2
    params = {}
    for name, out_dim in HEADS:
        key, k1, k2, k3, k4 = jax.random.split(key, 5)
        w1 = jax.random.normal(k1, (in_features, hidden), jnp.float32) / jnp.sqrt(in_features)
        b1 = jax.random.normal(k2, (1, hidden), jnp.float32) * 0.01
        w2 = jax.random.normal(k3, (hidden, out_dim), jnp.float32) / jnp.sqrt(hidden)
        b2 = jax.random.normal(k4, (1, out_dim), jnp.float32) * 0.01
        params[name] = (w1, b1, w2, b2)
    return params


def pack_params(params):
    """Pack per-head params into the fused kernel layout (weights cast to bf16)."""
    hidden = params[HEADS[0][0]][0].shape[1]
    assert hidden % 128 == 0, (
        f"hidden={hidden} must be a multiple of 128 for lane-aligned head slices")
    w1s, b1s, w2s, b2s = [], [], [], []
    for name, out_dim in HEADS:
        w1, b1, w2, b2 = params[name]
        w1s.append(w1)
        b1s.append(b1)
        w2s.append(jnp.zeros((hidden, OUT_SLOT), jnp.float32).at[:, :out_dim].set(w2))
        b2s.append(jnp.zeros((1, OUT_SLOT), jnp.float32).at[:, :out_dim].set(b2))
    w1_cat = jnp.concatenate(w1s, axis=1).astype(jnp.bfloat16)   # [D, 4H]    bf16
    b1_cat = jnp.concatenate(b1s, axis=1)                        # [1, 4H]    f32
    w2_pck = jnp.stack(w2s, axis=0).astype(jnp.bfloat16)         # [4, H, 32] bf16
    b2_pck = jnp.concatenate(b2s, axis=1)                        # [1, 128]   f32
    return w1_cat, b1_cat, w2_pck, b2_pck


@jax.jit
def mtl_classifier_mlp(x, w1_cat, b1_cat, w2_pck, b2_pck):
    B, D = x.shape
    H4 = w1_cat.shape[1]
    H = H4 // N_HEADS

    # Batch tiling: weights are VMEM-resident (constant block index); x / out tiles
    # are double-buffered by the grid pipeline.  TILE_B=256 for large batches
    # (MXU row depth, bf16 sublane packing); small batches run as a single tile.
    TILE_B = 256 if B >= 256 else _round_up(max(B, 1), 8)
    B_pad = _round_up(B, TILE_B)
    if B_pad != B:
        x = jnp.pad(x, ((0, B_pad - B), (0, 0)))
    grid = (B_pad // TILE_B,)

    flops = 2 * B_pad * D * H4 + 2 * B_pad * H4 * OUT_SLOT
    bytes_accessed = (w1_cat.size * 2 + w2_pck.size * 2 +
                      b1_cat.size * 4 + b2_pck.size * 4 +
                      B_pad * D * 4 + B_pad * OUT_PACKED * 4)

    out = pl.pallas_call(
        _mtl_mlp_kernel,
        out_shape=jax.ShapeDtypeStruct((B_pad, OUT_PACKED), jnp.float32),
        grid=grid,
        in_specs=[
            pl.BlockSpec((TILE_B, D), lambda i: (i, 0)),            # x tile
            pl.BlockSpec((D, H4), lambda i: (0, 0)),                # w1 (resident)
            pl.BlockSpec((1, H4), lambda i: (0, 0)),                # b1 (resident)
            pl.BlockSpec((N_HEADS, H, OUT_SLOT), lambda i: (0, 0, 0)),  # w2 (resident)
            pl.BlockSpec((1, OUT_PACKED), lambda i: (0, 0)),        # b2 (resident)
        ],
        out_specs=pl.BlockSpec((TILE_B, OUT_PACKED), lambda i: (i, 0)),
        compiler_params=pltpu.CompilerParams(
            dimension_semantics=("parallel",),
            vmem_limit_bytes=8 << 20),
        cost_estimate=pl.CostEstimate(flops=flops, transcendentals=0,
                                      bytes_accessed=bytes_accessed),
    )(x, w1_cat, b1_cat, w2_pck, b2_pck)

    out = out[:B]
    # Slice the packed [B, 128] tile back to the true head widths.
    outs = []
    for k, (_, out_dim) in enumerate(HEADS):
        outs.append(out[:, k * OUT_SLOT:k * OUT_SLOT + out_dim])
    return tuple(outs)   # (x_exp, x_aro, x_val, x_au)


def _reference(x, params):
    """Pure-JAX reference with matching numerics (bf16 matmul inputs, f32 accum)."""
    outs = []
    xb = x.astype(jnp.bfloat16)
    for name, out_dim in HEADS:
        w1, b1, w2, b2 = params[name]
        h = jnp.dot(xb, w1.astype(jnp.bfloat16), preferred_element_type=jnp.float32) + b1
        h = jnp.maximum(h, 0.0)
        o = jnp.dot(h.astype(jnp.bfloat16), w2.astype(jnp.bfloat16),
                    preferred_element_type=jnp.float32) + b2
        outs.append(o)
    return tuple(outs)


if __name__ == "__main__":
    B = 8
    in_features = 512   # module default; hidden = 256 (multiple of 128 -> aligned slices)

    kx, kp = jax.random.split(jax.random.PRNGKey(0))
    x = jax.random.normal(kx, (B, in_features), jnp.float32)
    params = init_params(kp, in_features)
    packed = pack_params(params)

    got = jax.block_until_ready(mtl_classifier_mlp(x, *packed))
    ref = _reference(x, params)

    assert got[0].shape == (B, 8) and got[1].shape == (B, 1)
    assert got[2].shape == (B, 1) and got[3].shape == (B, 12)
    for g, r in zip(got, ref):
        assert jnp.allclose(g, r, atol=2e-3, rtol=2e-3), float(jnp.max(jnp.abs(g - r)))

    print("KERNEL_OK")
</pallas_src>

<mosaic_0001>
module attributes {stable_mosaic.version = 11 : i64} {
  func.func @_mtl_mlp_kernel(%arg0: i32, %arg1: memref<8x512xf32, #tpu.memory_space<vmem>>, %arg2: memref<512x1024xbf16, #tpu.memory_space<vmem>>, %arg3: memref<1x1024xf32, #tpu.memory_space<vmem>>, %arg4: memref<4x256x32xbf16, #tpu.memory_space<vmem>>, %arg5: memref<1x128xf32, #tpu.memory_space<vmem>>, %arg6: memref<8x128xf32, #tpu.memory_space<vmem>>) attributes {dimension_semantics = [#tpu.dimension_semantics<parallel>], iteration_bounds = array<i64: 1>, scalar_prefetch = 0 : i64, scratch_operands = 0 : i64, tpu.core_type = #tpu.core_type<tc>, window_params = [{transform_indices = @transform_0, window_bounds = array<i64: 8, 512>}, {pipeline_mode = #tpu.pipeline_mode<synchronous>, transform_indices = @transform_1, window_bounds = array<i64: 512, 1024>}, {pipeline_mode = #tpu.pipeline_mode<synchronous>, transform_indices = @transform_2, window_bounds = array<i64: 1, 1024>}, {pipeline_mode = #tpu.pipeline_mode<synchronous>, transform_indices = @transform_3, window_bounds = array<i64: 4, 256, 32>}, {pipeline_mode = #tpu.pipeline_mode<synchronous>, transform_indices = @transform_4, window_bounds = array<i64: 1, 128>}, {transform_indices = @transform_5, window_bounds = array<i64: 8, 128>}]} {
    %c0 = arith.constant 0 : index
    %c0_0 = arith.constant 0 : index
    %0 = vector.load %arg1[%c0, %c0_0] : memref<8x512xf32, #tpu.memory_space<vmem>>, vector<8x512xf32>
    %1 = arith.truncf %0 : vector<8x512xf32> to vector<8x512xbf16>
    %c0_1 = arith.constant 0 : index
    %c0_2 = arith.constant 0 : index
    %2 = vector.load %arg2[%c0_1, %c0_2] : memref<512x1024xbf16, #tpu.memory_space<vmem>>, vector<512x1024xbf16>
    %cst = arith.constant dense<0.000000e+00> : vector<8x1024xf32>
    %3 = tpu.matmul %1, %2, %cst {dimension_numbers = #tpu.dot_dimension_numbers<[1], [0], [0], [1], [0, 0, 1, 1], [], []>} : vector<8x512xbf16>, vector<512x1024xbf16>, vector<8x1024xf32> -> vector<8x1024xf32>
    %c0_3 = arith.constant 0 : index
    %c0_4 = arith.constant 0 : index
    %4 = vector.load %arg3[%c0_3, %c0_4] : memref<1x1024xf32, #tpu.memory_space<vmem>>, vector<1x1024xf32>
    %5 = vector.broadcast %4 : vector<1x1024xf32> to vector<8x1024xf32>
    %6 = arith.addf %3, %5 : vector<8x1024xf32>
    %cst_5 = arith.constant 0.000000e+00 : f32
    %7 = vector.broadcast %cst_5 : f32 to vector<8x1024xf32>
    %8 = arith.maximumf %6, %7 : vector<8x1024xf32>
    %9 = arith.truncf %8 : vector<8x1024xf32> to vector<8x1024xbf16>
    %10 = vector.extract_strided_slice %9 {offsets = [0, 0], sizes = [8, 256], strides = [1, 1]} : vector<8x1024xbf16> to vector<8x256xbf16>
    %c0_6 = arith.constant 0 : index
    %c0_7 = arith.constant 0 : index
    %c0_8 = arith.constant 0 : index
    %11 = vector.load %arg4[%c0_6, %c0_7, %c0_8] : memref<4x256x32xbf16, #tpu.memory_space<vmem>>, vector<1x256x32xbf16>
    %12 = vector.shape_cast %11 : vector<1x256x32xbf16> to vector<256x32xbf16>
    %cst_9 = arith.constant dense<0.000000e+00> : vector<8x32xf32>
    %13 = tpu.matmul %10, %12, %cst_9 {dimension_numbers = #tpu.dot_dimension_numbers<[1], [0], [0], [1], [0, 0, 1, 1], [], []>} : vector<8x256xbf16>, vector<256x32xbf16>, vector<8x32xf32> -> vector<8x32xf32>
    %14 = vector.extract_strided_slice %9 {offsets = [0, 256], sizes = [8, 256], strides = [1, 1]} : vector<8x1024xbf16> to vector<8x256xbf16>
    %c1 = arith.constant 1 : index
    %c0_10 = arith.constant 0 : index
    %c0_11 = arith.constant 0 : index
    %15 = vector.load %arg4[%c1, %c0_10, %c0_11] : memref<4x256x32xbf16, #tpu.memory_space<vmem>>, vector<1x256x32xbf16>
    %16 = vector.shape_cast %15 : vector<1x256x32xbf16> to vector<256x32xbf16>
    %cst_12 = arith.constant dense<0.000000e+00> : vector<8x32xf32>
    %17 = tpu.matmul %14, %16, %cst_12 {dimension_numbers = #tpu.dot_dimension_numbers<[1], [0], [0], [1], [0, 0, 1, 1], [], []>} : vector<8x256xbf16>, vector<256x32xbf16>, vector<8x32xf32> -> vector<8x32xf32>
    %18 = vector.extract_strided_slice %9 {offsets = [0, 512], sizes = [8, 256], strides = [1, 1]} : vector<8x1024xbf16> to vector<8x256xbf16>
    %c2 = arith.constant 2 : index
    %c0_13 = arith.constant 0 : index
    %c0_14 = arith.constant 0 : index
    %19 = vector.load %arg4[%c2, %c0_13, %c0_14] : memref<4x256x32xbf16, #tpu.memory_space<vmem>>, vector<1x256x32xbf16>
    %20 = vector.shape_cast %19 : vector<1x256x32xbf16> to vector<256x32xbf16>
    %cst_15 = arith.constant dense<0.000000e+00> : vector<8x32xf32>
    %21 = tpu.matmul %18, %20, %cst_15 {dimension_numbers = #tpu.dot_dimension_numbers<[1], [0], [0], [1], [0, 0, 1, 1], [], []>} : vector<8x256xbf16>, vector<256x32xbf16>, vector<8x32xf32> -> vector<8x32xf32>
    %22 = vector.extract_strided_slice %9 {offsets = [0, 768], sizes = [8, 256], strides = [1, 1]} : vector<8x1024xbf16> to vector<8x256xbf16>
    %c3 = arith.constant 3 : index
    %c0_16 = arith.constant 0 : index
    %c0_17 = arith.constant 0 : index
    %23 = vector.load %arg4[%c3, %c0_16, %c0_17] : memref<4x256x32xbf16, #tpu.memory_space<vmem>>, vector<1x256x32xbf16>
    %24 = vector.shape_cast %23 : vector<1x256x32xbf16> to vector<256x32xbf16>
    %cst_18 = arith.constant dense<0.000000e+00> : vector<8x32xf32>
    %25 = tpu.matmul %22, %24, %cst_18 {dimension_numbers = #tpu.dot_dimension_numbers<[1], [0], [0], [1], [0, 0, 1, 1], [], []>} : vector<8x256xbf16>, vector<256x32xbf16>, vector<8x32xf32> -> vector<8x32xf32>
    %26 = tpu.concatenate %13, %17, %21, %25 in 1 : vector<8x32xf32>, vector<8x32xf32>, vector<8x32xf32>, vector<8x32xf32> -> vector<8x128xf32>
    %c0_19 = arith.constant 0 : index
    %c0_20 = arith.constant 0 : index
    %27 = vector.load %arg5[%c0_19, %c0_20] : memref<1x128xf32, #tpu.memory_space<vmem>>, vector<1x128xf32>
    %28 = vector.broadcast %27 : vector<1x128xf32> to vector<8x128xf32>
    %29 = arith.addf %26, %28 : vector<8x128xf32>
    %c0_21 = arith.constant 0 : index
    %c0_22 = arith.constant 0 : index
    %30 = vector.load %arg6[%c0_21, %c0_22] : memref<8x128xf32, #tpu.memory_space<vmem>>, vector<8x128xf32>
    tpu.vector_store %arg6[%c0_21, %c0_22], %29 {strides = array<i32>} : memref<8x128xf32, #tpu.memory_space<vmem>>, vector<8x128xf32>,
    return
  }
  func.func @transform_0(%arg0: i32) -> (i32, i32) {
    %c0_i32 = arith.constant 0 : i32
    %c0_i32_0 = arith.constant 0 : i32
    return %arg0, %c0_i32 : i32, i32
  }
  func.func @transform_1(%arg0: i32) -> (i32, i32) {
    %c0_i32 = arith.constant 0 : i32
    %c0_i32_0 = arith.constant 0 : i32
    %c0_i32_1 = arith.constant 0 : i32
    return %c0_i32, %c0_i32_0 : i32, i32
  }
  func.func @transform_2(%arg0: i32) -> (i32, i32) {
    %c0_i32 = arith.constant 0 : i32
    %c0_i32_0 = arith.constant 0 : i32
    %c0_i32_1 = arith.constant 0 : i32
    return %c0_i32, %c0_i32_0 : i32, i32
  }
  func.func @transform_3(%arg0: i32) -> (i32, i32, i32) {
    %c0_i32 = arith.constant 0 : i32
    %c0_i32_0 = arith.constant 0 : i32
    %c0_i32_1 = arith.constant 0 : i32
    %c0_i32_2 = arith.constant 0 : i32
    return %c0_i32, %c0_i32_0, %c0_i32_1 : i32, i32, i32
  }
  func.func @transform_4(%arg0: i32) -> (i32, i32) {
    %c0_i32 = arith.constant 0 : i32
    %c0_i32_0 = arith.constant 0 : i32
    %c0_i32_1 = arith.constant 0 : i32
    return %c0_i32, %c0_i32_0 : i32, i32
  }
  func.func @transform_5(%arg0: i32) -> (i32, i32) {
    %c0_i32 = arith.constant 0 : i32
    %c0_i32_0 = arith.constant 0 : i32
    return %arg0, %c0_i32 : i32, i32
  }
}

</mosaic_0001>

<llo_original>
// kernel: mtl_classifier_mlp.1
$region0: #{mtl_classifier_mlp.1}
  #allocation0 [shape = 'u32[]', space=smem, size = 0x4, offset = 0x4, fixed_abs, tag = 'smem constant byte address 0x4 - core index']
  #allocation1 [shape = 'u32[144,128]{1,0:T(1,128)}', space=vmem, size = 0x12000, scoped, tag = 'internal scratch']
  %s0 = inlined_call_operand.vmem [shape: f32[8,512], index: 0, kind: input, shape index: {}]
  %s1 = inlined_call_operand.hbm [shape: bf16[512,1024], index: 1, kind: input, shape index: {}]
  %s2 = inlined_call_operand.vmem [shape: f32[1,1024], index: 2, kind: input, shape index: {}]
  %s3 = inlined_call_operand.vmem [shape: bf16[4,256,32], index: 3, kind: input, shape index: {}]
  %s4 = inlined_call_operand.vmem [shape: f32[1,128], index: 4, kind: input, shape index: {}]
  %s5 = inlined_call_operand.vmem [shape: f32[8,128], index: 5, kind: output, shape index: {}]
  %s6 = sld [smem:[#allocation0]]
  $region34: #{mtl_classifier_mlp.1} parent=0
    _
  %s8 = ssub.s32 1, %s6
  %s9 = scalar_select 0, %s8, %s6
  $region1: #{mtl_classifier_mlp.1} parent=0
    #allocation2 [shape = 'u8[1048576]{0}', space=vmem, size = 0x100000, scoped, tag = 'input window, operand 1, single buffered']
    #allocation3 [shape = 's32[1]{0}', space=sflag, size = 0x4, scoped, tag = 'scoped memory for mtl_classifier_mlp.1']
    %10 = vsyncpa [#allocation3], 0
    // Predicated region
    $region2: #{mtl_classifier_mlp.1} parent=1 // pred_check
      _
    $region3: #{mtl_classifier_mlp.1} parent=1 // pred_check_branch
      %12 = sbr.rel (0) target = $region5
    $region4: #{mtl_classifier_mlp.1} parent=1 // pred_region
      _
    $region5: #{mtl_classifier_mlp.1} parent=1 // pred_fallthru
      _
    // Predicated region
    $region6: #{mtl_classifier_mlp.1} parent=1 // pred_check
      _
    $region7: #{mtl_classifier_mlp.1} parent=1 // pred_check_branch
      %14 = sbr.rel (0) target = $region9
    $region8: #{mtl_classifier_mlp.1} parent=1 // pred_region
      %s16 = ssub.s32 32768, 32768
      %17 = vsyncadd [#allocation3], %s16
      %s18 = sshll.u32 [#allocation2], 4
      %s19 = int_to_ptr.vmem [resolvable:$true] %s18
      %24 = dma.hbm_to_vmem [thread:$0]  %s1, 32768, %s19, [#allocation3], 512, 512, 32
    $region9: #{mtl_classifier_mlp.1} parent=1 // pred_fallthru
      _
    // Predicated region
    $region10: #{mtl_classifier_mlp.1} parent=1 // pred_check
      _
    $region11: #{mtl_classifier_mlp.1} parent=1 // pred_check_branch
      %26 = sbr.rel (0) target = $region13
    $region12: #{mtl_classifier_mlp.1} parent=1 // pred_region
      _
    $region13: #{mtl_classifier_mlp.1} parent=1 // pred_fallthru
      _
    // Predicated region
    $region14: #{mtl_classifier_mlp.1} parent=1 // pred_check
      _
    $region15: #{mtl_classifier_mlp.1} parent=1 // pred_check_branch
      %28 = sbr.rel (0) target = $region17
    $region16: #{mtl_classifier_mlp.1} parent=1 // pred_region
      _
    $region17: #{mtl_classifier_mlp.1} parent=1 // pred_fallthru
      _
    // Predicated region
    $region18: #{mtl_classifier_mlp.1} parent=1 // pred_check
      _
    $region19: #{mtl_classifier_mlp.1} parent=1 // pred_check_branch
      %30 = sbr.rel (0) target = $region21
    $region20: #{mtl_classifier_mlp.1} parent=1 // pred_region
      _
    $region21: #{mtl_classifier_mlp.1} parent=1 // pred_fallthru
      _
    // Predicated region
    $region22: #{mtl_classifier_mlp.1} parent=1 // pred_check
      _
    $region23: #{mtl_classifier_mlp.1} parent=1 // pred_check_branch
      %32 = sbr.rel (0) target = $region25
    $region24: #{mtl_classifier_mlp.1} parent=1 // pred_region
      %33 = dma.done [#allocation3], 32768
    $region25: #{mtl_classifier_mlp.1} parent=1 // pred_fallthru
      _
    %v35 = vld [vmem:[%s0] sm:$0xff]
    %v36 = vld [vmem:[%s0 + $0x8] sm:$0xff]
    %v37 = vld [vmem:[%s0 + $0x10] sm:$0xff]
    %v38 = vld [vmem:[%s0 + $0x18] sm:$0xff]
    %v39 = vpack.c.bf16 %v35, %v35
    %v40 = vpack.c.bf16 %v36, %v36
    %v41 = vpack.c.bf16 %v37, %v37
    %v42 = vpack.c.bf16 %v38, %v38
    %v43 = vld [vmem:[#allocation2] sm:$0xff]
    %v44 = vld [vmem:[#allocation2 + $0x8] sm:$0xff]
    %v45 = vld [vmem:[#allocation2 + $0x10] sm:$0xff]
    %v46 = vld [vmem:[#allocation2 + $0x18] sm:$0xff]
    %v47 = vld [vmem:[#allocation2 + $0x20] sm:$0xff]
    %v48 = vld [vmem:[#allocation2 + $0x28] sm:$0xff]
    %v49 = vld [vmem:[#allocation2 + $0x30] sm:$0xff]
    %v50 = vld [vmem:[#allocation2 + $0x38] sm:$0xff]
    %v51 = vld [vmem:[#allocation2 + $0x40] sm:$0xff]
    %v52 = vld [vmem:[#allocation2 + $0x48] sm:$0xff]
    %v53 = vld [vmem:[#allocation2 + $0x50] sm:$0xff]
    %v54 = vld [vmem:[#allocation2 + $0x58] sm:$0xff]
    %v55 = vld [vmem:[#allocation2 + $0x60] sm:$0xff]
    %v56 = vld [vmem:[#allocation2 + $0x68] sm:$0xff]
    %v57 = vld [vmem:[#allocation2 + $0x70] sm:$0xff]
    %v58 = vld [vmem:[#allocation2 + $0x78] sm:$0xff]
    %v59 = vld [vmem:[#allocation2 + $0x80] sm:$0xff]
    %v60 = vld [vmem:[#allocation2 + $0x88] sm:$0xff]
    %v61 = vld [vmem:[#allocation2 + $0x90] sm:$0xff]
    %v62 = vld [vmem:[#allocation2 + $0x98] sm:$0xff]
    %v63 = vld [vmem:[#allocation2 + $0xa0] sm:$0xff]
    %v64 = vld [vmem:[#allocation2 + $0xa8] sm:$0xff]
    %v65 = vld [vmem:[#allocation2 + $0xb0] sm:$0xff]
    %v66 = vld [vmem:[#allocation2 + $0xb8] sm:$0xff]
    %v67 = vld [vmem:[#allocation2 + $0xc0] sm:$0xff]
    %v68 = vld [vmem:[#allocation2 + $0xc8] sm:$0xff]
    %v69 = vld [vmem:[#allocation2 + $0xd0] sm:$0xff]
    %v70 = vld [vmem:[#allocation2 + $0xd8] sm:$0xff]
    %v71 = vld [vmem:[#allocation2 + $0xe0] sm:$0xff]
    %v72 = vld [vmem:[#allocation2 + $0xe8] sm:$0xff]
    %v73 = vld [vmem:[#allocation2 + $0xf0] sm:$0xff]
    %v74 = vld [vmem:[#allocation2 + $0xf8] sm:$0xff]
    %v75 = vld [vmem:[#allocation2 + $0x100] sm:$0xff]
    %v76 = vld [vmem:[#allocation2 + $0x108] sm:$0xff]
    %v77 = vld [vmem:[#allocation2 + $0x110] sm:$0xff]
    %v78 = vld [vmem:[#allocation2 + $0x118] sm:$0xff]
    %v79 = vld [vmem:[#allocation2 + $0x120] sm:$0xff]
    %v80 = vld [vmem:[#allocation2 + $0x128] sm:$0xff]
    %v81 = vld [vmem:[#allocation2 + $0x130] sm:$0xff]
    %v82 = vld [vmem:[#allocation2 + $0x138] sm:$0xff]
    %v83 = vld [vmem:[#allocation2 + $0x140] sm:$0xff]
    %v84 = vld [vmem:[#allocation2 + $0x148] sm:$0xff]
    %v85 = vld [vmem:[#allocation2 + $0x150] sm:$0xff]
    %v86 = vld [vmem:[#allocation2 + $0x158] sm:$0xff]
    %v87 = vld [vmem:[#allocation2 + $0x160] sm:$0xff]
    %v88 = vld [vmem:[#allocation2 + $0x168] sm:$0xff]
    %v89 = vld [vmem:[#allocation2 + $0x170] sm:$0xff]
    %v90 = vld [vmem:[#allocation2 + $0x178] sm:$0xff]
    %v91 = vld [vmem:[#allocation2 + $0x180] sm:$0xff]
    %v92 = vld [vmem:[#allocation2 + $0x188] sm:$0xff]
    %v93 = vld [vmem:[#allocation2 + $0x190] sm:$0xff]
    %v94 = vld [vmem:[#allocation2 + $0x198] sm:$0xff]
    %v95 = vld [vmem:[#allocation2 + $0x1a0] sm:$0xff]
    %v96 = vld [vmem:[#allocation2 + $0x1a8] sm:$0xff]
    %v97 = vld [vmem:[#allocation2 + $0x1b0] sm:$0xff]
    %v98 = vld [vmem:[#allocation2 + $0x1b8] sm:$0xff]
    %v99 = vld [vmem:[#allocation2 + $0x1c0] sm:$0xff]
    %v100 = vld [vmem:[#allocation2 + $0x1c8] sm:$0xff]
    %v101 = vld [vmem:[#allocation2 + $0x1d0] sm:$0xff]
    %v102 = vld [vmem:[#allocation2 + $0x1d8] sm:$0xff]
    %v103 = vld [vmem:[#allocation2 + $0x1e0] sm:$0xff]
    %v104 = vld [vmem:[#allocation2 + $0x1e8] sm:$0xff]
    %v105 = vld [vmem:[#allocation2 + $0x1f0] sm:$0xff]
    %v106 = vld [vmem:[#allocation2 + $0x1f8] sm:$0xff]
    %v107 = vld [vmem:[#allocation2 + $0x200] sm:$0xff]
    %v108 = vld [vmem:[#allocation2 + $0x208] sm:$0xff]
    %v109 = vld [vmem:[#allocation2 + $0x210] sm:$0xff]
    %v110 = vld [vmem:[#allocation2 + $0x218] sm:$0xff]
    %v111 = vld [vmem:[#allocation2 + $0x220] sm:$0xff]
    %v112 = vld [vmem:[#allocation2 + $0x228] sm:$0xff]
    %v113 = vld [vmem:[#allocation2 + $0x230] sm:$0xff]
    %v114 = vld [vmem:[#allocation2 + $0x238] sm:$0xff]
    %v115 = vld [vmem:[#allocation2 + $0x240] sm:$0xff]
    %v116 = vld [vmem:[#allocation2 + $0x248] sm:$0xff]
    %v117 = vld [vmem:[#allocation2 + $0x250] sm:$0xff]
    %v118 = vld [vmem:[#allocation2 + $0x258] sm:$0xff]
    %v119 = vld [vmem:[#allocation2 + $0x260] sm:$0xff]
    %v120 = vld [vmem:[#allocation2 + $0x268] sm:$0xff]
    %v121 = vld [vmem:[#allocation2 + $0x270] sm:$0xff]
    %v122 = vld [vmem:[#allocation2 + $0x278] sm:$0xff]
    %v123 = vld [vmem:[#allocation2 + $0x280] sm:$0xff]
    %v124 = vld [vmem:[#allocation2 + $0x288] sm:$0xff]
    %v125 = vld [vmem:[#allocation2 + $0x290] sm:$0xff]
    %v126 = vld [vmem:[#allocation2 + $0x298] sm:$0xff]
    %v127 = vld [vmem:[#allocation2 + $0x2a0] sm:$0xff]
    %v128 = vld [vmem:[#allocation2 + $0x2a8] sm:$0xff]
    %v129 = vld [vmem:[#allocation2 + $0x2b0] sm:$0xff]
    %v130 = vld [vmem:[#allocation2 + $0x2b8] sm:$0xff]
    %v131 = vld [vmem:[#allocation2 + $0x2c0] sm:$0xff]
    %v132 = vld [vmem:[#allocation2 + $0x2c8] sm:$0xff]
    %v133 = vld [vmem:[#allocation2 + $0x2d0] sm:$0xff]
    %v134 = vld [vmem:[#allocation2 + $0x2d8] sm:$0xff]
    %v135 = vld [vmem:[#allocation2 + $0x2e0] sm:$0xff]
    %v136 = vld [vmem:[#allocation2 + $0x2e8] sm:$0xff]
    %v137 = vld [vmem:[#allocation2 + $0x2f0] sm:$0xff]
    %v138 = vld [vmem:[#allocation2 + $0x2f8] sm:$0xff]
    %v139 = vld [vmem:[#allocation2 + $0x300] sm:$0xff]
    %v140 = vld [vmem:[#allocation2 + $0x308] sm:$0xff]
    %v141 = vld [vmem:[#allocation2 + $0x310] sm:$0xff]
    %v142 = vld [vmem:[#allocation2 + $0x318] sm:$0xff]
    %v143 = vld [vmem:[#allocation2 + $0x320] sm:$0xff]
    %v144 = vld [vmem:[#allocation2 + $0x328] sm:$0xff]
    %v145 = vld [vmem:[#allocation2 + $0x330] sm:$0xff]
    %v146 = vld [vmem:[#allocation2 + $0x338] sm:$0xff]
    %v147 = vld [vmem:[#allocation2 + $0x340] sm:$0xff]
    %v148 = vld [vmem:[#allocation2 + $0x348] sm:$0xff]
    %v149 = vld [vmem:[#allocation2 + $0x350] sm:$0xff]
    %v150 = vld [vmem:[#allocation2 + $0x358] sm:$0xff]
    %v151 = vld [vmem:[#allocation2 + $0x360] sm:$0xff]
    %v152 = vld [vmem:[#allocation2 + $0x368] sm:$0xff]
    %v153 = vld [vmem:[#allocation2 + $0x370] sm:$0xff]
    %v154 = vld [vmem:[#allocation2 + $0x378] sm:$0xff]
    %v155 = vld [vmem:[#allocation2 + $0x380] sm:$0xff]
    %v156 = vld [vmem:[#allocation2 + $0x388] sm:$0xff]
    %v157 = vld [vmem:[#allocation2 + $0x390] sm:$0xff]
    %v158 = vld [vmem:[#allocation2 + $0x398] sm:$0xff]
    %v159 = vld [vmem:[#allocation2 + $0x3a0] sm:$0xff]
    %v160 = vld [vmem:[#allocation2 + $0x3a8] sm:$0xff]
    %v161 = vld [vmem:[#allocation2 + $0x3b0] sm:$0xff]
    %v162 = vld [vmem:[#allocation2 + $0x3b8] sm:$0xff]
    %v163 = vld [vmem:[#allocation2 + $0x3c0] sm:$0xff]
    %v164 = vld [vmem:[#allocation2 + $0x3c8] sm:$0xff]
    %v165 = vld [vmem:[#allocation2 + $0x3d0] sm:$0xff]
    %v166 = vld [vmem:[#allocation2 + $0x3d8] sm:$0xff]
    %v167 = vld [vmem:[#allocation2 + $0x3e0] sm:$0xff]
    %v168 = vld [vmem:[#allocation2 + $0x3e8] sm:$0xff]
    %v169 = vld [vmem:[#allocation2 + $0x3f0] sm:$0xff]
    %v170 = vld [vmem:[#allocation2 + $0x3f8] sm:$0xff]
    %v171 = vld [vmem:[#allocation2 + $0x400] sm:$0xff]
    %v172 = vld [vmem:[#allocation2 + $0x408] sm:$0xff]
    %v173 = vld [vmem:[#allocation2 + $0x410] sm:$0xff]
    %v174 = vld [vmem:[#allocation2 + $0x418] sm:$0xff]
    %v175 = vld [vmem:[#allocation2 + $0x420] sm:$0xff]
    %v176 = vld [vmem:[#allocation2 + $0x428] sm:$0xff]
    %v177 = vld [vmem:[#allocation2 + $0x430] sm:$0xff]
    %v178 = vld [vmem:[#allocation2 + $0x438] sm:$0xff]
    %v179 = vld [vmem:[#allocation2 + $0x440] sm:$0xff]
    %v180 = vld [vmem:[#allocation2 + $0x448] sm:$0xff]
    %v181 = vld [vmem:[#allocation2 + $0x450] sm:$0xff]
    %v182 = vld [vmem:[#allocation2 + $0x458] sm:$0xff]
    %v183 = vld [vmem:[#allocation2 + $0x460] sm:$0xff]
    %v184 = vld [vmem:[#allocation2 + $0x468] sm:$0xff]
    %v185 = vld [vmem:[#allocation2 + $0x470] sm:$0xff]
    %v186 = vld [vmem:[#allocation2 + $0x478] sm:$0xff]
    %v187 = vld [vmem:[#allocation2 + $0x480] sm:$0xff]
    %v188 = vld [vmem:[#allocation2 + $0x488] sm:$0xff]
    %v189 = vld [vmem:[#allocation2 + $0x490] sm:$0xff]
    %v190 = vld [vmem:[#allocation2 + $0x498] sm:$0xff]
    %v191 = vld [vmem:[#allocation2 + $0x4a0] sm:$0xff]
    %v192 = vld [vmem:[#allocation2 + $0x4a8] sm:$0xff]
    %v193 = vld [vmem:[#allocation2 + $0x4b0] sm:$0xff]
    %v194 = vld [vmem:[#allocation2 + $0x4b8] sm:$0xff]
    %v195 = vld [vmem:[#allocation2 + $0x4c0] sm:$0xff]
    %v196 = vld [vmem:[#allocation2 + $0x4c8] sm:$0xff]
    %v197 = vld [vmem:[#allocation2 + $0x4d0] sm:$0xff]
    %v198 = vld [vmem:[#allocation2 + $0x4d8] sm:$0xff]
    %v199 = vld [vmem:[#allocation2 + $0x4e0] sm:$0xff]
    %v200 = vld [vmem:[#allocation2 + $0x4e8] sm:$0xff]
    %v201 = vld [vmem:[#allocation2 + $0x4f0] sm:$0xff]
    %v202 = vld [vmem:[#allocation2 + $0x4f8] sm:$0xff]
    %v203 = vld [vmem:[#allocation2 + $0x500] sm:$0xff]
    %v204 = vld [vmem:[#allocation2 + $0x508] sm:$0xff]
    %v205 = vld [vmem:[#allocation2 + $0x510] sm:$0xff]
    %v206 = vld [vmem:[#allocation2 + $0x518] sm:$0xff]
    %v207 = vld [vmem:[#allocation2 + $0x520] sm:$0xff]
    %v208 = vld [vmem:[#allocation2 + $0x528] sm:$0xff]
    %v209 = vld [vmem:[#allocation2 + $0x530] sm:$0xff]
    %v210 = vld [vmem:[#allocation2 + $0x538] sm:$0xff]
    %v211 = vld [vmem:[#allocation2 + $0x540] sm:$0xff]
    %v212 = vld [vmem:[#allocation2 + $0x548] sm:$0xff]
    %v213 = vld [vmem:[#allocation2 + $0x550] sm:$0xff]
    %v214 = vld [vmem:[#allocation2 + $0x558] sm:$0xff]
    %v215 = vld [vmem:[#allocation2 + $0x560] sm:$0xff]
    %v216 = vld [vmem:[#allocation2 + $0x568] sm:$0xff]
    %v217 = vld [vmem:[#allocation2 + $0x570] sm:$0xff]
    %v218 = vld [vmem:[#allocation2 + $0x578] sm:$0xff]
    %v219 = vld [vmem:[#allocation2 + $0x580] sm:$0xff]
    %v220 = vld [vmem:[#allocation2 + $0x588] sm:$0xff]
    %v221 = vld [vmem:[#allocation2 + $0x590] sm:$0xff]
    %v222 = vld [vmem:[#allocation2 + $0x598] sm:$0xff]
    %v223 = vld [vmem:[#allocation2 + $0x5a0] sm:$0xff]
    %v224 = vld [vmem:[#allocation2 + $0x5a8] sm:$0xff]
    %v225 = vld [vmem:[#allocation2 + $0x5b0] sm:$0xff]
    %v226 = vld [vmem:[#allocation2 + $0x5b8] sm:$0xff]
    %v227 = vld [vmem:[#allocation2 + $0x5c0] sm:$0xff]
    %v228 = vld [vmem:[#allocation2 + $0x5c8] sm:$0xff]
    %v229 = vld [vmem:[#allocation2 + $0x5d0] sm:$0xff]
    %v230 = vld [vmem:[#allocation2 + $0x5d8] sm:$0xff]
    %v231 = vld [vmem:[#allocation2 + $0x5e0] sm:$0xff]
    %v232 = vld [vmem:[#allocation2 + $0x5e8] sm:$0xff]
    %v233 = vld [vmem:[#allocation2 + $0x5f0] sm:$0xff]
    %v234 = vld [vmem:[#allocation2 + $0x5f8] sm:$0xff]
    %v235 = vld [vmem:[#allocation2 + $0x600] sm:$0xff]
    %v236 = vld [vmem:[#allocation2 + $0x608] sm:$0xff]
    %v237 = vld [vmem:[#allocation2 + $0x610] sm:$0xff]
    %v238 = vld [vmem:[#allocation2 + $0x618] sm:$0xff]
    %v239 = vld [vmem:[#allocation2 + $0x620] sm:$0xff]
    %v240 = vld [vmem:[#allocation2 + $0x628] sm:$0xff]
    %v241 = vld [vmem:[#allocation2 + $0x630] sm:$0xff]
    %v242 = vld [vmem:[#allocation2 + $0x638] sm:$0xff]
    %v243 = vld [vmem:[#allocation2 + $0x640] sm:$0xff]
    %v244 = vld [vmem:[#allocation2 + $0x648] sm:$0xff]
    %v245 = vld [vmem:[#allocation2 + $0x650] sm:$0xff]
    %v246 = vld [vmem:[#allocation2 + $0x658] sm:$0xff]
    %v247 = vld [vmem:[#allocation2 + $0x660] sm:$0xff]
    %v248 = vld [vmem:[#allocation2 + $0x668] sm:$0xff]
    %v249 = vld [vmem:[#allocation2 + $0x670] sm:$0xff]
    %v250 = vld [vmem:[#allocation2 + $0x678] sm:$0xff]
    %v251 = vld [vmem:[#allocation2 + $0x680] sm:$0xff]
    %v252 = vld [vmem:[#allocation2 + $0x688] sm:$0xff]
    %v253 = vld [vmem:[#allocation2 + $0x690] sm:$0xff]
    %v254 = vld [vmem:[#allocation2 + $0x698] sm:$0xff]
    %v255 = vld [vmem:[#allocation2 + $0x6a0] sm:$0xff]
    %v256 = vld [vmem:[#allocation2 + $0x6a8] sm:$0xff]
    %v257 = vld [vmem:[#allocation2 + $0x6b0] sm:$0xff]
    %v258 = vld [vmem:[#allocation2 + $0x6b8] sm:$0xff]
    %v259 = vld [vmem:[#allocation2 + $0x6c0] sm:$0xff]
    %v260 = vld [vmem:[#allocation2 + $0x6c8] sm:$0xff]
    %v261 = vld [vmem:[#allocation2 + $0x6d0] sm:$0xff]
    %v262 = vld [vmem:[#allocation2 + $0x6d8] sm:$0xff]
    %v263 = vld [vmem:[#allocation2 + $0x6e0] sm:$0xff]
    %v264 = vld [vmem:[#allocation2 + $0x6e8] sm:$0xff]
    %v265 = vld [vmem:[#allocation2 + $0x6f0] sm:$0xff]
    %v266 = vld [vmem:[#allocation2 + $0x6f8] sm:$0xff]
    %v267 = vld [vmem:[#allocation2 + $0x700] sm:$0xff]
    %v268 = vld [vmem:[#allocation2 + $0x708] sm:$0xff]
    %v269 = vld [vmem:[#allocation2 + $0x710] sm:$0xff]
    %v270 = vld [vmem:[#allocation2 + $0x718] sm:$0xff]
    %v271 = vld [vmem:[#allocation2 + $0x720] sm:$0xff]
    %v272 = vld [vmem:[#allocation2 + $0x728] sm:$0xff]
    %v273 = vld [vmem:[#allocation2 + $0x730] sm:$0xff]
    %v274 = vld [vmem:[#allocation2 + $0x738] sm:$0xff]
    %v275 = vld [vmem:[#allocation2 + $0x740] sm:$0xff]
    %v276 = vld [vmem:[#allocation2 + $0x748] sm:$0xff]
    %v277 = vld [vmem:[#allocation2 + $0x750] sm:$0xff]
    %v278 = vld [vmem:[#allocation2 + $0x758] sm:$0xff]
    %v279 = vld [vmem:[#allocation2 + $0x760] sm:$0xff]
    %v280 = vld [vmem:[#allocation2 + $0x768] sm:$0xff]
    %v281 = vld [vmem:[#allocation2 + $0x770] sm:$0xff]
    %v282 = vld [vmem:[#allocation2 + $0x778] sm:$0xff]
    %v283 = vld [vmem:[#allocation2 + $0x780] sm:$0xff]
    %v284 = vld [vmem:[#allocation2 + $0x788] sm:$0xff]
    %v285 = vld [vmem:[#allocation2 + $0x790] sm:$0xff]
    %v286 = vld [vmem:[#allocation2 + $0x798] sm:$0xff]
    %v287 = vld [vmem:[#allocation2 + $0x7a0] sm:$0xff]
    %v288 = vld [vmem:[#allocation2 + $0x7a8] sm:$0xff]
    %v289 = vld [vmem:[#allocation2 + $0x7b0] sm:$0xff]
    %v290 = vld [vmem:[#allocation2 + $0x7b8] sm:$0xff]
    %v291 = vld [vmem:[#allocation2 + $0x7c0] sm:$0xff]
    %v292 = vld [vmem:[#allocation2 + $0x7c8] sm:$0xff]
    %v293 = vld [vmem:[#allocation2 + $0x7d0] sm:$0xff]
    %v294 = vld [vmem:[#allocation2 + $0x7d8] sm:$0xff]
    %v295 = vld [vmem:[#allocation2 + $0x7e0] sm:$0xff]
    %v296 = vld [vmem:[#allocation2 + $0x7e8] sm:$0xff]
    %v297 = vld [vmem:[#allocation2 + $0x7f0] sm:$0xff]
    %v298 = vld [vmem:[#allocation2 + $0x7f8] sm:$0xff]
    %v299 = vld [vmem:[%s2] sm:$0xff]
    %v301 = vlaneseq
    %v302 = vshrl.u32 %v301, 7
    %v303 = vsub.s32 0, %v302
    %v304 = vrot.slane %v299, %v303
    %v305 = vlaneseq
    %v306 = vshrl.u32 %v305, 7
    %v307 = vsub.s32 1, %v306
    %v308 = vrot.slane %v299, %v307
    %v309 = vlaneseq
    %v310 = vshrl.u32 %v309, 7
    %v311 = vsub.s32 2, %v310
    %v312 = vrot.slane %v299, %v311
    %v313 = vlaneseq
    %v314 = vshrl.u32 %v313, 7
    %v315 = vsub.s32 3, %v314
    %v316 = vrot.slane %v299, %v315
    %v317 = vlaneseq
    %v318 = vshrl.u32 %v317, 7
    %v319 = vsub.s32 4, %v318
    %v320 = vrot.slane %v299, %v319
    %v321 = vlaneseq
    %v322 = vshrl.u32 %v321, 7
    %v323 = vsub.s32 5, %v322
    %v324 = vrot.slane %v299, %v323
    %v325 = vlaneseq
    %v326 = vshrl.u32 %v325, 7
    %v327 = vsub.s32 6, %v326
    %v328 = vrot.slane %v299, %v327
    %v329 = vlaneseq
    %v330 = vshrl.u32 %v329, 7
    %v331 = vsub.s32 7, %v330
    %v332 = vrot.slane %v299, %v331
    %v597 = vunpack.c.l.b16 %v43
    %v598 = vunpack.c.h.b16 %v43
    %v599 = vunpack.c.l.b16 %v44
    %v600 = vunpack.c.h.b16 %v44
    %v601 = vunpack.c.l.b16 %v45
    %v602 = vunpack.c.h.b16 %v45
    %v603 = vunpack.c.l.b16 %v46
    %v604 = vunpack.c.h.b16 %v46
    %v605 = vunpack.c.l.b16 %v47
    %v606 = vunpack.c.h.b16 %v47
    %v607 = vunpack.c.l.b16 %v48
    %v608 = vunpack.c.h.b16 %v48
    %v609 = vunpack.c.l.b16 %v49
    %v610 = vunpack.c.h.b16 %v49
    %v611 = vunpack.c.l.b16 %v50
    %v612 = vunpack.c.h.b16 %v50
    %v613 = vunpack.c.l.b16 %v51
    %v614 = vunpack.c.h.b16 %v51
    %v615 = vunpack.c.l.b16 %v52
    %v616 = vunpack.c.h.b16 %v52
    %v617 = vunpack.c.l.b16 %v53
    %v618 = vunpack.c.h.b16 %v53
    %v619 = vunpack.c.l.b16 %v54
    %v620 = vunpack.c.h.b16 %v54
    %v621 = vunpack.c.l.b16 %v55
    %v622 = vunpack.c.h.b16 %v55
    %v623 = vunpack.c.l.b16 %v56
    %v624 = vunpack.c.h.b16 %v56
    %v625 = vunpack.c.l.b16 %v57
    %v626 = vunpack.c.h.b16 %v57
    %v627 = vunpack.c.l.b16 %v58
    %v628 = vunpack.c.h.b16 %v58
    %v629 = vunpack.c.l.b16 %v59
    %v630 = vunpack.c.h.b16 %v59
    %v631 = vunpack.c.l.b16 %v60
    %v632 = vunpack.c.h.b16 %v60
    %v633 = vunpack.c.l.b16 %v61
    %v634 = vunpack.c.h.b16 %v61
    %v635 = vunpack.c.l.b16 %v62
    %v636 = vunpack.c.h.b16 %v62
    %v637 = vunpack.c.l.b16 %v63
    %v638 = vunpack.c.h.b16 %v63
    %v639 = vunpack.c.l.b16 %v64
    %v640 = vunpack.c.h.b16 %v64
    %v641 = vunpack.c.l.b16 %v65
    %v642 = vunpack.c.h.b16 %v65
    %v643 = vunpack.c.l.b16 %v66
    %v644 = vunpack.c.h.b16 %v66
    %v645 = vunpack.c.l.b16 %v67
    %v646 = vunpack.c.h.b16 %v67
    %v647 = vunpack.c.l.b16 %v68
    %v648 = vunpack.c.h.b16 %v68
    %v649 = vunpack.c.l.b16 %v69
    %v650 = vunpack.c.h.b16 %v69
    %v651 = vunpack.c.l.b16 %v70
    %v652 = vunpack.c.h.b16 %v70
    %v653 = vunpack.c.l.b16 %v71
    %v654 = vunpack.c.h.b16 %v71
    %v655 = vunpack.c.l.b16 %v72
    %v656 = vunpack.c.h.b16 %v72
    %v657 = vunpack.c.l.b16 %v73
    %v658 = vunpack.c.h.b16 %v73
    %v659 = vunpack.c.l.b16 %v74
    %v660 = vunpack.c.h.b16 %v74
    %v661 = vunpack.c.l.b16 %v75
    %v662 = vunpack.c.h.b16 %v75
    %v663 = vunpack.c.l.b16 %v76
    %v664 = vunpack.c.h.b16 %v76
    %v665 = vunpack.c.l.b16 %v77
    %v666 = vunpack.c.h.b16 %v77
    %v667 = vunpack.c.l.b16 %v78
    %v668 = vunpack.c.h.b16 %v78
    %v669 = vunpack.c.l.b16 %v79
    %v670 = vunpack.c.h.b16 %v79
    %v671 = vunpack.c.l.b16 %v80
    %v672 = vunpack.c.h.b16 %v80
    %v673 = vunpack.c.l.b16 %v81
    %v674 = vunpack.c.h.b16 %v81
    %v675 = vunpack.c.l.b16 %v82
    %v676 = vunpack.c.h.b16 %v82
    %v677 = vunpack.c.l.b16 %v83
    %v678 = vunpack.c.h.b16 %v83
    %v679 = vunpack.c.l.b16 %v84
    %v680 = vunpack.c.h.b16 %v84
    %v681 = vunpack.c.l.b16 %v85
    %v682 = vunpack.c.h.b16 %v85
    %v683 = vunpack.c.l.b16 %v86
    %v684 = vunpack.c.h.b16 %v86
    %v685 = vunpack.c.l.b16 %v87
    %v686 = vunpack.c.h.b16 %v87
    %v687 = vunpack.c.l.b16 %v88
    %v688 = vunpack.c.h.b16 %v88
    %v689 = vunpack.c.l.b16 %v89
    %v690 = vunpack.c.h.b16 %v89
    %v691 = vunpack.c.l.b16 %v90
    %v692 = vunpack.c.h.b16 %v90
    %v693 = vunpack.c.l.b16 %v91
    %v694 = vunpack.c.h.b16 %v91
    %v695 = vunpack.c.l.b16 %v92
    %v696 = vunpack.c.h.b16 %v92
    %v697 = vunpack.c.l.b16 %v93
    %v698 = vunpack.c.h.b16 %v93
    %v699 = vunpack.c.l.b16 %v94
    %v700 = vunpack.c.h.b16 %v94
    %v701 = vunpack.c.l.b16 %v95
    %v702 = vunpack.c.h.b16 %v95
    %v703 = vunpack.c.l.b16 %v96
    %v704 = vunpack.c.h.b16 %v96
    %v705 = vunpack.c.l.b16 %v97
    %v706 = vunpack.c.h.b16 %v97
    %v707 = vunpack.c.l.b16 %v98
    %v708 = vunpack.c.h.b16 %v98
    %v709 = vunpack.c.l.b16 %v99
    %v710 = vunpack.c.h.b16 %v99
    %v711 = vunpack.c.l.b16 %v100
    %v712 = vunpack.c.h.b16 %v100
    %v713 = vunpack.c.l.b16 %v101
    %v714 = vunpack.c.h.b16 %v101
    %v715 = vunpack.c.l.b16 %v102
    %v716 = vunpack.c.h.b16 %v102
    %v717 = vunpack.c.l.b16 %v103
    %v718 = vunpack.c.h.b16 %v103
    %v719 = vunpack.c.l.b16 %v104
    %v720 = vunpack.c.h.b16 %v104
    %v721 = vunpack.c.l.b16 %v105
    %v722 = vunpack.c.h.b16 %v105
    %v723 = vunpack.c.l.b16 %v106
    %v724 = vunpack.c.h.b16 %v106
    %v725 = vunpack.c.l.b16 %v107
    %v726 = vunpack.c.h.b16 %v107
    %v727 = vunpack.c.l.b16 %v108
    %v728 = vunpack.c.h.b16 %v108
    %v729 = vunpack.c.l.b16 %v109
    %v730 = vunpack.c.h.b16 %v109
    %v731 = vunpack.c.l.b16 %v110
    %v732 = vunpack.c.h.b16 %v110
    %v733 = vunpack.c.l.b16 %v111
    %v734 = vunpack.c.h.b16 %v111
    %v735 = vunpack.c.l.b16 %v112
    %v736 = vunpack.c.h.b16 %v112
    %v737 = vunpack.c.l.b16 %v113
    %v738 = vunpack.c.h.b16 %v113
    %v739 = vunpack.c.l.b16 %v114
    %v740 = vunpack.c.h.b16 %v114
    %v741 = vunpack.c.l.b16 %v115
    %v742 = vunpack.c.h.b16 %v115
    %v743 = vunpack.c.l.b16 %v116
    %v744 = vunpack.c.h.b16 %v116
    %v745 = vunpack.c.l.b16 %v117
    %v746 = vunpack.c.h.b16 %v117
    %v747 = vunpack.c.l.b16 %v118
    %v748 = vunpack.c.h.b16 %v118
    %v749 = vunpack.c.l.b16 %v119
    %v750 = vunpack.c.h.b16 %v119
    %v751 = vunpack.c.l.b16 %v120
    %v752 = vunpack.c.h.b16 %v120
    %v753 = vunpack.c.l.b16 %v121
    %v754 = vunpack.c.h.b16 %v121
    %v755 = vunpack.c.l.b16 %v122
    %v756 = vunpack.c.h.b16 %v122
    %v757 = vunpack.c.l.b16 %v123
    %v758 = vunpack.c.h.b16 %v123
    %v759 = vunpack.c.l.b16 %v124
    %v760 = vunpack.c.h.b16 %v124
    %v761 = vunpack.c.l.b16 %v125
    %v762 = vunpack.c.h.b16 %v125
    %v763 = vunpack.c.l.b16 %v126
    %v764 = vunpack.c.h.b16 %v126
    %v765 = vunpack.c.l.b16 %v127
    %v766 = vunpack.c.h.b16 %v127
    %v767 = vunpack.c.l.b16 %v128
    %v768 = vunpack.c.h.b16 %v128
    %v769 = vunpack.c.l.b16 %v129
    %v770 = vunpack.c.h.b16 %v129
    %v771 = vunpack.c.l.b16 %v130
    %v772 = vunpack.c.h.b16 %v130
    %v773 = vunpack.c.l.b16 %v131
    %v774 = vunpack.c.h.b16 %v131
    %v775 = vunpack.c.l.b16 %v132
    %v776 = vunpack.c.h.b16 %v132
    %v777 = vunpack.c.l.b16 %v133
    %v778 = vunpack.c.h.b16 %v133
    %v779 = vunpack.c.l.b16 %v134
    %v780 = vunpack.c.h.b16 %v134
    %v781 = vunpack.c.l.b16 %v135
    %v782 = vunpack.c.h.b16 %v135
    %v783 = vunpack.c.l.b16 %v136
    %v784 = vunpack.c.h.b16 %v136
    %v785 = vunpack.c.l.b16 %v137
    %v786 = vunpack.c.h.b16 %v137
    %v787 = vunpack.c.l.b16 %v138
    %v788 = vunpack.c.h.b16 %v138
    %v789 = vunpack.c.l.b16 %v139
    %v790 = vunpack.c.h.b16 %v139
    %v791 = vunpack.c.l.b16 %v140
    %v792 = vunpack.c.h.b16 %v140
    %v793 = vunpack.c.l.b16 %v141
    %v794 = vunpack.c.h.b16 %v141
    %v795 = vunpack.c.l.b16 %v142
    %v796 = vunpack.c.h.b16 %v142
    %v797 = vunpack.c.l.b16 %v143
    %v798 = vunpack.c.h.b16 %v143
    %v799 = vunpack.c.l.b16 %v144
    %v800 = vunpack.c.h.b16 %v144
    %v801 = vunpack.c.l.b16 %v145
    %v802 = vunpack.c.h.b16 %v145
    %v803 = vunpack.c.l.b16 %v146
    %v804 = vunpack.c.h.b16 %v146
    %v805 = vunpack.c.l.b16 %v147
    %v806 = vunpack.c.h.b16 %v147
    %v807 = vunpack.c.l.b16 %v148
    %v808 = vunpack.c.h.b16 %v148
    %v809 = vunpack.c.l.b16 %v149
    %v810 = vunpack.c.h.b16 %v149
    %v811 = vunpack.c.l.b16 %v150
    %v812 = vunpack.c.h.b16 %v150
    %v813 = vunpack.c.l.b16 %v151
    %v814 = vunpack.c.h.b16 %v151
    %v815 = vunpack.c.l.b16 %v152
    %v816 = vunpack.c.h.b16 %v152
    %v817 = vunpack.c.l.b16 %v153
    %v818 = vunpack.c.h.b16 %v153
    %v819 = vunpack.c.l.b16 %v154
    %v820 = vunpack.c.h.b16 %v154
    %v821 = vunpack.c.l.b16 %v155
    %v822 = vunpack.c.h.b16 %v155
    %v823 = vunpack.c.l.b16 %v156
    %v824 = vunpack.c.h.b16 %v156
    %v825 = vunpack.c.l.b16 %v157
    %v826 = vunpack.c.h.b16 %v157
    %v827 = vunpack.c.l.b16 %v158
    %v828 = vunpack.c.h.b16 %v158
    %v829 = vunpack.c.l.b16 %v159
    %v830 = vunpack.c.h.b16 %v159
    %v831 = vunpack.c.l.b16 %v160
    %v832 = vunpack.c.h.b16 %v160
    %v833 = vunpack.c.l.b16 %v161
    %v834 = vunpack.c.h.b16 %v161
    %v835 = vunpack.c.l.b16 %v162
    %v836 = vunpack.c.h.b16 %v162
    %v837 = vunpack.c.l.b16 %v163
    %v838 = vunpack.c.h.b16 %v163
    %v839 = vunpack.c.l.b16 %v164
    %v840 = vunpack.c.h.b16 %v164
    %v841 = vunpack.c.l.b16 %v165
    %v842 = vunpack.c.h.b16 %v165
    %v843 = vunpack.c.l.b16 %v166
    %v844 = vunpack.c.h.b16 %v166
    %v845 = vunpack.c.l.b16 %v167
    %v846 = vunpack.c.h.b16 %v167
    %v847 = vunpack.c.l.b16 %v168
    %v848 = vunpack.c.h.b16 %v168
    %v849 = vunpack.c.l.b16 %v169
    %v850 = vunpack.c.h.b16 %v169
    %v851 = vunpack.c.l.b16 %v170
    %v852 = vunpack.c.h.b16 %v170
    %v853 = vunpack.c.l.b16 %v171
    %v854 = vunpack.c.h.b16 %v171
    %v855 = vunpack.c.l.b16 %v172
    %v856 = vunpack.c.h.b16 %v172
    %v857 = vunpack.c.l.b16 %v173
    %v858 = vunpack.c.h.b16 %v173
    %v859 = vunpack.c.l.b16 %v174
    %v860 = vunpack.c.h.b16 %v174
    %v861 = vunpack.c.l.b16 %v175
    %v862 = vunpack.c.h.b16 %v175
    %v863 = vunpack.c.l.b16 %v176
    %v864 = vunpack.c.h.b16 %v176
    %v865 = vunpack.c.l.b16 %v177
    %v866 = vunpack.c.h.b16 %v177
    %v867 = vunpack.c.l.b16 %v178
    %v868 = vunpack.c.h.b16 %v178
    %v869 = vunpack.c.l.b16 %v179
    %v870 = vunpack.c.h.b16 %v179
    %v871 = vunpack.c.l.b16 %v180
    %v872 = vunpack.c.h.b16 %v180
    %v873 = vunpack.c.l.b16 %v181
    %v874 = vunpack.c.h.b16 %v181
    %v875 = vunpack.c.l.b16 %v182
    %v876 = vunpack.c.h.b16 %v182
    %v877 = vunpack.c.l.b16 %v183
    %v878 = vunpack.c.h.b16 %v183
    %v879 = vunpack.c.l.b16 %v184
    %v880 = vunpack.c.h.b16 %v184
    %v881 = vunpack.c.l.b16 %v185
    %v882 = vunpack.c.h.b16 %v185
    %v883 = vunpack.c.l.b16 %v186
    %v884 = vunpack.c.h.b16 %v186
    %v885 = vunpack.c.l.b16 %v187
    %v886 = vunpack.c.h.b16 %v187
    %v887 = vunpack.c.l.b16 %v188
    %v888 = vunpack.c.h.b16 %v188
    %v889 = vunpack.c.l.b16 %v189
    %v890 = vunpack.c.h.b16 %v189
    %v891 = vunpack.c.l.b16 %v190
    %v892 = vunpack.c.h.b16 %v190
    %v893 = vunpack.c.l.b16 %v191
    %v894 = vunpack.c.h.b16 %v191
    %v895 = vunpack.c.l.b16 %v192
    %v896 = vunpack.c.h.b16 %v192
    %v897 = vunpack.c.l.b16 %v193
    %v898 = vunpack.c.h.b16 %v193
    %v899 = vunpack.c.l.b16 %v194
    %v900 = vunpack.c.h.b16 %v194
    %v901 = vunpack.c.l.b16 %v195
    %v902 = vunpack.c.h.b16 %v195
    %v903 = vunpack.c.l.b16 %v196
    %v904 = vunpack.c.h.b16 %v196
    %v905 = vunpack.c.l.b16 %v197
    %v906 = vunpack.c.h.b16 %v197
    %v907 = vunpack.c.l.b16 %v198
    %v908 = vunpack.c.h.b16 %v198
    %v909 = vunpack.c.l.b16 %v199
    %v910 = vunpack.c.h.b16 %v199
    %v911 = vunpack.c.l.b16 %v200
    %v912 = vunpack.c.h.b16 %v200
    %v913 = vunpack.c.l.b16 %v201
    %v914 = vunpack.c.h.b16 %v201
    %v915 = vunpack.c.l.b16 %v202
    %v916 = vunpack.c.h.b16 %v202
    %v917 = vunpack.c.l.b16 %v203
    %v918 = vunpack.c.h.b16 %v203
    %v919 = vunpack.c.l.b16 %v204
    %v920 = vunpack.c.h.b16 %v204
    %v921 = vunpack.c.l.b16 %v205
    %v922 = vunpack.c.h.b16 %v205
    %v923 = vunpack.c.l.b16 %v206
    %v924 = vunpack.c.h.b16 %v206
    %v925 = vunpack.c.l.b16 %v207
    %v926 = vunpack.c.h.b16 %v207
    %v927 = vunpack.c.l.b16 %v208
    %v928 = vunpack.c.h.b16 %v208
    %v929 = vunpack.c.l.b16 %v209
    %v930 = vunpack.c.h.b16 %v209
    %v931 = vunpack.c.l.b16 %v210
    %v932 = vunpack.c.h.b16 %v210
    %v933 = vunpack.c.l.b16 %v211
    %v934 = vunpack.c.h.b16 %v211
    %v935 = vunpack.c.l.b16 %v212
    %v936 = vunpack.c.h.b16 %v212
    %v937 = vunpack.c.l.b16 %v213
    %v938 = vunpack.c.h.b16 %v213
    %v939 = vunpack.c.l.b16 %v214
    %v940 = vunpack.c.h.b16 %v214
    %v941 = vunpack.c.l.b16 %v215
    %v942 = vunpack.c.h.b16 %v215
    %v943 = vunpack.c.l.b16 %v216
    %v944 = vunpack.c.h.b16 %v216
    %v945 = vunpack.c.l.b16 %v217
    %v946 = vunpack.c.h.b16 %v217
    %v947 = vunpack.c.l.b16 %v218
    %v948 = vunpack.c.h.b16 %v218
    %v949 = vunpack.c.l.b16 %v219
    %v950 = vunpack.c.h.b16 %v219
    %v951 = vunpack.c.l.b16 %v220
    %v952 = vunpack.c.h.b16 %v220
    %v953 = vunpack.c.l.b16 %v221
    %v954 = vunpack.c.h.b16 %v221
    %v955 = vunpack.c.l.b16 %v222
    %v956 = vunpack.c.h.b16 %v222
    %v957 = vunpack.c.l.b16 %v223
    %v958 = vunpack.c.h.b16 %v223
    %v959 = vunpack.c.l.b16 %v224
    %v960 = vunpack.c.h.b16 %v224
    %v961 = vunpack.c.l.b16 %v225
    %v962 = vunpack.c.h.b16 %v225
    %v963 = vunpack.c.l.b16 %v226
    %v964 = vunpack.c.h.b16 %v226
    %v965 = vunpack.c.l.b16 %v227
    %v966 = vunpack.c.h.b16 %v227
    %v967 = vunpack.c.l.b16 %v228
    %v968 = vunpack.c.h.b16 %v228
    %v969 = vunpack.c.l.b16 %v229
    %v970 = vunpack.c.h.b16 %v229
    %v971 = vunpack.c.l.b16 %v230
    %v972 = vunpack.c.h.b16 %v230
    %v973 = vunpack.c.l.b16 %v231
    %v974 = vunpack.c.h.b16 %v231
    %v975 = vunpack.c.l.b16 %v232
    %v976 = vunpack.c.h.b16 %v232
    %v977 = vunpack.c.l.b16 %v233
    %v978 = vunpack.c.h.b16 %v233
    %v979 = vunpack.c.l.b16 %v234
    %v980 = vunpack.c.h.b16 %v234
    %v981 = vunpack.c.l.b16 %v235
    %v982 = vunpack.c.h.b16 %v235
    %v983 = vunpack.c.l.b16 %v236
    %v984 = vunpack.c.h.b16 %v236
    %v985 = vunpack.c.l.b16 %v237
    %v986 = vunpack.c.h.b16 %v237
    %v987 = vunpack.c.l.b16 %v238
    %v988 = vunpack.c.h.b16 %v238
    %v989 = vunpack.c.l.b16 %v239
    %v990 = vunpack.c.h.b16 %v239
    %v991 = vunpack.c.l.b16 %v240
    %v992 = vunpack.c.h.b16 %v240
    %v993 = vunpack.c.l.b16 %v241
    %v994 = vunpack.c.h.b16 %v241
    %v995 = vunpack.c.l.b16 %v242
    %v996 = vunpack.c.h.b16 %v242
    %v997 = vunpack.c.l.b16 %v243
    %v998 = vunpack.c.h.b16 %v243
    %v999 = vunpack.c.l.b16 %v244
    %v1000 = vunpack.c.h.b16 %v244
    %v1001 = vunpack.c.l.b16 %v245
    %v1002 = vunpack.c.h.b16 %v245
    %v1003 = vunpack.c.l.b16 %v246
    %v1004 = vunpack.c.h.b16 %v246
    %v1005 = vunpack.c.l.b16 %v247
    %v1006 = vunpack.c.h.b16 %v247
    %v1007 = vunpack.c.l.b16 %v248
    %v1008 = vunpack.c.h.b16 %v248
    %v1009 = vunpack.c.l.b16 %v249
    %v1010 = vunpack.c.h.b16 %v249
    %v1011 = vunpack.c.l.b16 %v250
    %v1012 = vunpack.c.h.b16 %v250
    %v1013 = vunpack.c.l.b16 %v251
    %v1014 = vunpack.c.h.b16 %v251
    %v1015 = vunpack.c.l.b16 %v252
    %v1016 = vunpack.c.h.b16 %v252
    %v1017 = vunpack.c.l.b16 %v253
    %v1018 = vunpack.c.h.b16 %v253
    %v1019 = vunpack.c.l.b16 %v254
    %v1020 = vunpack.c.h.b16 %v254
    %v1021 = vunpack.c.l.b16 %v255
    %v1022 = vunpack.c.h.b16 %v255
    %v1023 = vunpack.c.l.b16 %v256
    %v1024 = vunpack.c.h.b16 %v256
    %v1025 = vunpack.c.l.b16 %v257
    %v1026 = vunpack.c.h.b16 %v257
    %v1027 = vunpack.c.l.b16 %v258
    %v1028 = vunpack.c.h.b16 %v258
    %v1029 = vunpack.c.l.b16 %v259
    %v1030 = vunpack.c.h.b16 %v259
    %v1031 = vunpack.c.l.b16 %v260
    %v1032 = vunpack.c.h.b16 %v260
    %v1033 = vunpack.c.l.b16 %v261
    %v1034 = vunpack.c.h.b16 %v261
    %v1035 = vunpack.c.l.b16 %v262
    %v1036 = vunpack.c.h.b16 %v262
    %v1037 = vunpack.c.l.b16 %v263
    %v1038 = vunpack.c.h.b16 %v263
    %v1039 = vunpack.c.l.b16 %v264
    %v1040 = vunpack.c.h.b16 %v264
    %v1041 = vunpack.c.l.b16 %v265
    %v1042 = vunpack.c.h.b16 %v265
    %v1043 = vunpack.c.l.b16 %v266
    %v1044 = vunpack.c.h.b16 %v266
    %v1045 = vunpack.c.l.b16 %v267
    %v1046 = vunpack.c.h.b16 %v267
    %v1047 = vunpack.c.l.b16 %v268
    %v1048 = vunpack.c.h.b16 %v268
    %v1049 = vunpack.c.l.b16 %v269
    %v1050 = vunpack.c.h.b16 %v269
    %v1051 = vunpack.c.l.b16 %v270
    %v1052 = vunpack.c.h.b16 %v270
    %v1053 = vunpack.c.l.b16 %v271
    %v1054 = vunpack.c.h.b16 %v271
    %v1055 = vunpack.c.l.b16 %v272
    %v1056 = vunpack.c.h.b16 %v272
    %v1057 = vunpack.c.l.b16 %v273
    %v1058 = vunpack.c.h.b16 %v273
    %v1059 = vunpack.c.l.b16 %v274
    %v1060 = vunpack.c.h.b16 %v274
    %v1061 = vunpack.c.l.b16 %v275
    %v1062 = vunpack.c.h.b16 %v275
    %v1063 = vunpack.c.l.b16 %v276
    %v1064 = vunpack.c.h.b16 %v276
    %v1065 = vunpack.c.l.b16 %v277
    %v1066 = vunpack.c.h.b16 %v277
    %v1067 = vunpack.c.l.b16 %v278
    %v1068 = vunpack.c.h.b16 %v278
    %v1069 = vunpack.c.l.b16 %v279
    %v1070 = vunpack.c.h.b16 %v279
    %v1071 = vunpack.c.l.b16 %v280
    %v1072 = vunpack.c.h.b16 %v280
    %v1073 = vunpack.c.l.b16 %v281
    %v1074 = vunpack.c.h.b16 %v281
    %v1075 = vunpack.c.l.b16 %v282
    %v1076 = vunpack.c.h.b16 %v282
    %v1077 = vunpack.c.l.b16 %v283
    %v1078 = vunpack.c.h.b16 %v283
    %v1079 = vunpack.c.l.b16 %v284
    %v1080 = vunpack.c.h.b16 %v284
    %v1081 = vunpack.c.l.b16 %v285
    %v1082 = vunpack.c.h.b16 %v285
    %v1083 = vunpack.c.l.b16 %v286
    %v1084 = vunpack.c.h.b16 %v286
    %v1085 = vunpack.c.l.b16 %v287
    %v1086 = vunpack.c.h.b16 %v287
    %v1087 = vunpack.c.l.b16 %v288
    %v1088 = vunpack.c.h.b16 %v288
    %v1089 = vunpack.c.l.b16 %v289
    %v1090 = vunpack.c.h.b16 %v289
    %v1091 = vunpack.c.l.b16 %v290
    %v1092 = vunpack.c.h.b16 %v290
    %v1093 = vunpack.c.l.b16 %v291
    %v1094 = vunpack.c.h.b16 %v291
    %v1095 = vunpack.c.l.b16 %v292
    %v1096 = vunpack.c.h.b16 %v292
    %v1097 = vunpack.c.l.b16 %v293
    %v1098 = vunpack.c.h.b16 %v293
    %v1099 = vunpack.c.l.b16 %v294
    %v1100 = vunpack.c.h.b16 %v294
    %v1101 = vunpack.c.l.b16 %v295
    %v1102 = vunpack.c.h.b16 %v295
    %v1103 = vunpack.c.l.b16 %v296
    %v1104 = vunpack.c.h.b16 %v296
    %v1105 = vunpack.c.l.b16 %v297
    %v1106 = vunpack.c.h.b16 %v297
    %v1107 = vunpack.c.l.b16 %v298
    %v1108 = vunpack.c.h.b16 %v298
    %v1109 = vpack.c.b16 %v605, %v597
    %v1110 = vpack.c.b16 %v606, %v598
    %v1111 = vpack.c.b16 %v607, %v599
    %v1112 = vpack.c.b16 %v608, %v600
    %v1113 = vpack.c.b16 %v609, %v601
    %v1114 = vpack.c.b16 %v610, %v602
    %v1115 = vpack.c.b16 %v611, %v603
    %v1116 = vpack.c.b16 %v612, %v604
    %v1117 = vpack.c.b16 %v621, %v613
    %v1118 = vpack.c.b16 %v622, %v614
    %v1119 = vpack.c.b16 %v623, %v615
    %v1120 = vpack.c.b16 %v624, %v616
    %v1121 = vpack.c.b16 %v625, %v617
    %v1122 = vpack.c.b16 %v626, %v618
    %v1123 = vpack.c.b16 %v627, %v619
    %v1124 = vpack.c.b16 %v628, %v620
    %v1125 = vpack.c.b16 %v637, %v629
    %v1126 = vpack.c.b16 %v638, %v630
    %v1127 = vpack.c.b16 %v639, %v631
    %v1128 = vpack.c.b16 %v640, %v632
    %v1129 = vpack.c.b16 %v641, %v633
    %v1130 = vpack.c.b16 %v642, %v634
    %v1131 = vpack.c.b16 %v643, %v635
    %v1132 = vpack.c.b16 %v644, %v636
    %v1133 = vpack.c.b16 %v653, %v645
    %v1134 = vpack.c.b16 %v654, %v646
    %v1135 = vpack.c.b16 %v655, %v647
    %v1136 = vpack.c.b16 %v656, %v648
    %v1137 = vpack.c.b16 %v657, %v649
    %v1138 = vpack.c.b16 %v658, %v650
    %v1139 = vpack.c.b16 %v659, %v651
    %v1140 = vpack.c.b16 %v660, %v652
    %v1141 = vpack.c.b16 %v669, %v661
    %v1142 = vpack.c.b16 %v670, %v662
    %v1143 = vpack.c.b16 %v671, %v663
    %v1144 = vpack.c.b16 %v672, %v664
    %v1145 = vpack.c.b16 %v673, %v665
    %v1146 = vpack.c.b16 %v674, %v666
    %v1147 = vpack.c.b16 %v675, %v667
    %v1148 = vpack.c.b16 %v676, %v668
    %v1149 = vpack.c.b16 %v685, %v677
    %v1150 = vpack.c.b16 %v686, %v678
    %v1151 = vpack.c.b16 %v687, %v679
    %v1152 = vpack.c.b16 %v688, %v680
    %v1153 = vpack.c.b16 %v689, %v681
    %v1154 = vpack.c.b16 %v690, %v682
    %v1155 = vpack.c.b16 %v691, %v683
    %v1156 = vpack.c.b16 %v692, %v684
    %v1157 = vpack.c.b16 %v701, %v693
    %v1158 = vpack.c.b16 %v702, %v694
    %v1159 = vpack.c.b16 %v703, %v695
    %v1160 = vpack.c.b16 %v704, %v696
    %v1161 = vpack.c.b16 %v705, %v697
    %v1162 = vpack.c.b16 %v706, %v698
    %v1163 = vpack.c.b16 %v707, %v699
    %v1164 = vpack.c.b16 %v708, %v700
    %v1165 = vpack.c.b16 %v717, %v709
    %v1166 = vpack.c.b16 %v718, %v710
    %v1167 = vpack.c.b16 %v719, %v711
    %v1168 = vpack.c.b16 %v720, %v712
    %v1169 = vpack.c.b16 %v721, %v713
    %v1170 = vpack.c.b16 %v722, %v714
    %v1171 = vpack.c.b16 %v723, %v715
    %v1172 = vpack.c.b16 %v724, %v716
    %v1173 = vpack.c.b16 %v733, %v725
    %v1174 = vpack.c.b16 %v734, %v726
    %v1175 = vpack.c.b16 %v735, %v727
    %v1176 = vpack.c.b16 %v736, %v728
    %v1177 = vpack.c.b16 %v737, %v729
    %v1178 = vpack.c.b16 %v738, %v730
    %v1179 = vpack.c.b16 %v739, %v731
    %v1180 = vpack.c.b16 %v740, %v732
    %v1181 = vpack.c.b16 %v749, %v741
    %v1182 = vpack.c.b16 %v750, %v742
    %v1183 = vpack.c.b16 %v751, %v743
    %v1184 = vpack.c.b16 %v752, %v744
    %v1185 = vpack.c.b16 %v753, %v745
    %v1186 = vpack.c.b16 %v754, %v746
    %v1187 = vpack.c.b16 %v755, %v747
    %v1188 = vpack.c.b16 %v756, %v748
    %v1189 = vpack.c.b16 %v765, %v757
    %v1190 = vpack.c.b16 %v766, %v758
    %v1191 = vpack.c.b16 %v767, %v759
    %v1192 = vpack.c.b16 %v768, %v760
    %v1193 = vpack.c.b16 %v769, %v761
    %v1194 = vpack.c.b16 %v770, %v762
    %v1195 = vpack.c.b16 %v771, %v763
    %v1196 = vpack.c.b16 %v772, %v764
    %v1197 = vpack.c.b16 %v781, %v773
    %v1198 = vpack.c.b16 %v782, %v774
    %v1199 = vpack.c.b16 %v783, %v775
    %v1200 = vpack.c.b16 %v784, %v776
    %v1201 = vpack.c.b16 %v785, %v777
    %v1202 = vpack.c.b16 %v786, %v778
    %v1203 = vpack.c.b16 %v787, %v779
    %v1204 = vpack.c.b16 %v788, %v780
    %v1205 = vpack.c.b16 %v797, %v789
    %v1206 = vpack.c.b16 %v798, %v790
    %v1207 = vpack.c.b16 %v799, %v791
    %v1208 = vpack.c.b16 %v800, %v792
    %v1209 = vpack.c.b16 %v801, %v793
    %v1210 = vpack.c.b16 %v802, %v794
    %v1211 = vpack.c.b16 %v803, %v795
    %v1212 = vpack.c.b16 %v804, %v796
    %v1213 = vpack.c.b16 %v813, %v805
    %v1214 = vpack.c.b16 %v814, %v806
    %v1215 = vpack.c.b16 %v815, %v807
    %v1216 = vpack.c.b16 %v816, %v808
    %v1217 = vpack.c.b16 %v817, %v809
    %v1218 = vpack.c.b16 %v818, %v810
    %v1219 = vpack.c.b16 %v819, %v811
    %v1220 = vpack.c.b16 %v820, %v812
    %v1221 = vpack.c.b16 %v829, %v821
    %v1222 = vpack.c.b16 %v830, %v822
    %v1223 = vpack.c.b16 %v831, %v823
    %v1224 = vpack.c.b16 %v832, %v824
    %v1225 = vpack.c.b16 %v833, %v825
    %v1226 = vpack.c.b16 %v834, %v826
    %v1227 = vpack.c.b16 %v835, %v827
    %v1228 = vpack.c.b16 %v836, %v828
    %v1229 = vpack.c.b16 %v845, %v837
    %v1230 = vpack.c.b16 %v846, %v838
    %v1231 = vpack.c.b16 %v847, %v839
    %v1232 = vpack.c.b16 %v848, %v840
    %v1233 = vpack.c.b16 %v849, %v841
    %v1234 = vpack.c.b16 %v850, %v842
    %v1235 = vpack.c.b16 %v851, %v843
    %v1236 = vpack.c.b16 %v852, %v844
    %v1237 = vpack.c.b16 %v861, %v853
    %v1238 = vpack.c.b16 %v862, %v854
    %v1239 = vpack.c.b16 %v863, %v855
    %v1240 = vpack.c.b16 %v864, %v856
    %v1241 = vpack.c.b16 %v865, %v857
    %v1242 = vpack.c.b16 %v866, %v858
    %v1243 = vpack.c.b16 %v867, %v859
    %v1244 = vpack.c.b16 %v868, %v860
    %v1245 = vpack.c.b16 %v877, %v869
    %v1246 = vpack.c.b16 %v878, %v870
    %v1247 = vpack.c.b16 %v879, %v871
    %v1248 = vpack.c.b16 %v880, %v872
    %v1249 = vpack.c.b16 %v881, %v873
    %v1250 = vpack.c.b16 %v882, %v874
    %v1251 = vpack.c.b16 %v883, %v875
    %v1252 = vpack.c.b16 %v884, %v876
    %v1253 = vpack.c.b16 %v893, %v885
    %v1254 = vpack.c.b16 %v894, %v886
    %v1255 = vpack.c.b16 %v895, %v887
    %v1256 = vpack.c.b16 %v896, %v888
    %v1257 = vpack.c.b16 %v897, %v889
    %v1258 = vpack.c.b16 %v898, %v890
    %v1259 = vpack.c.b16 %v899, %v891
    %v1260 = vpack.c.b16 %v900, %v892
    %v1261 = vpack.c.b16 %v909, %v901
    %v1262 = vpack.c.b16 %v910, %v902
    %v1263 = vpack.c.b16 %v911, %v903
    %v1264 = vpack.c.b16 %v912, %v904
    %v1265 = vpack.c.b16 %v913, %v905
    %v1266 = vpack.c.b16 %v914, %v906
    %v1267 = vpack.c.b16 %v915, %v907
    %v1268 = vpack.c.b16 %v916, %v908
    %v1269 = vpack.c.b16 %v925, %v917
    %v1270 = vpack.c.b16 %v926, %v918
    %v1271 = vpack.c.b16 %v927, %v919
    %v1272 = vpack.c.b16 %v928, %v920
    %v1273 = vpack.c.b16 %v929, %v921
    %v1274 = vpack.c.b16 %v930, %v922
    %v1275 = vpack.c.b16 %v931, %v923
    %v1276 = vpack.c.b16 %v932, %v924
    %v1277 = vpack.c.b16 %v941, %v933
    %v1278 = vpack.c.b16 %v942, %v934
    %v1279 = vpack.c.b16 %v943, %v935
    %v1280 = vpack.c.b16 %v944, %v936
    %v1281 = vpack.c.b16 %v945, %v937
    %v1282 = vpack.c.b16 %v946, %v938
    %v1283 = vpack.c.b16 %v947, %v939
    %v1284 = vpack.c.b16 %v948, %v940
    %v1285 = vpack.c.b16 %v957, %v949
    %v1286 = vpack.c.b16 %v958, %v950
    %v1287 = vpack.c.b16 %v959, %v951
    %v1288 = vpack.c.b16 %v960, %v952
    %v1289 = vpack.c.b16 %v961, %v953
    %v1290 = vpack.c.b16 %v962, %v954
    %v1291 = vpack.c.b16 %v963, %v955
    %v1292 = vpack.c.b16 %v964, %v956
    %v1293 = vpack.c.b16 %v973, %v965
    %v1294 = vpack.c.b16 %v974, %v966
    %v1295 = vpack.c.b16 %v975, %v967
    %v1296 = vpack.c.b16 %v976, %v968
    %v1297 = vpack.c.b16 %v977, %v969
    %v1298 = vpack.c.b16 %v978, %v970
    %v1299 = vpack.c.b16 %v979, %v971
    %v1300 = vpack.c.b16 %v980, %v972
    %v1301 = vpack.c.b16 %v989, %v981
    %v1302 = vpack.c.b16 %v990, %v982
    %v1303 = vpack.c.b16 %v991, %v983
    %v1304 = vpack.c.b16 %v992, %v984
    %v1305 = vpack.c.b16 %v993, %v985
    %v1306 = vpack.c.b16 %v994, %v986
    %v1307 = vpack.c.b16 %v995, %v987
    %v1308 = vpack.c.b16 %v996, %v988
    %v1309 = vpack.c.b16 %v1005, %v997
    %v1310 = vpack.c.b16 %v1006, %v998
    %v1311 = vpack.c.b16 %v1007, %v999
    %v1312 = vpack.c.b16 %v1008, %v1000
    %v1313 = vpack.c.b16 %v1009, %v1001
    %v1314 = vpack.c.b16 %v1010, %v1002
    %v1315 = vpack.c.b16 %v1011, %v1003
    %v1316 = vpack.c.b16 %v1012, %v1004
    %v1317 = vpack.c.b16 %v1021, %v1013
    %v1318 = vpack.c.b16 %v1022, %v1014
    %v1319 = vpack.c.b16 %v1023, %v1015
    %v1320 = vpack.c.b16 %v1024, %v1016
    %v1321 = vpack.c.b16 %v1025, %v1017
    %v1322 = vpack.c.b16 %v1026, %v1018
    %v1323 = vpack.c.b16 %v1027, %v1019
    %v1324 = vpack.c.b16 %v1028, %v1020
    %v1325 = vpack.c.b16 %v1037, %v1029
    %v1326 = vpack.c.b16 %v1038, %v1030
    %v1327 = vpack.c.b16 %v1039, %v1031
    %v1328 = vpack.c.b16 %v1040, %v1032
    %v1329 = vpack.c.b16 %v1041, %v1033
    %v1330 = vpack.c.b16 %v1042, %v1034
    %v1331 = vpack.c.b16 %v1043, %v1035
    %v1332 = vpack.c.b16 %v1044, %v1036
    %v1333 = vpack.c.b16 %v1053, %v1045
    %v1334 = vpack.c.b16 %v1054, %v1046
    %v1335 = vpack.c.b16 %v1055, %v1047
    %v1336 = vpack.c.b16 %v1056, %v1048
    %v1337 = vpack.c.b16 %v1057, %v1049
    %v1338 = vpack.c.b16 %v1058, %v1050
    %v1339 = vpack.c.b16 %v1059, %v1051
    %v1340 = vpack.c.b16 %v1060, %v1052
    %v1341 = vpack.c.b16 %v1069, %v1061
    %v1342 = vpack.c.b16 %v1070, %v1062
    %v1343 = vpack.c.b16 %v1071, %v1063
    %v1344 = vpack.c.b16 %v1072, %v1064
    %v1345 = vpack.c.b16 %v1073, %v1065
    %v1346 = vpack.c.b16 %v1074, %v1066
    %v1347 = vpack.c.b16 %v1075, %v1067
    %v1348 = vpack.c.b16 %v1076, %v1068
    %v1349 = vpack.c.b16 %v1085, %v1077
    %v1350 = vpack.c.b16 %v1086, %v1078
    %v1351 = vpack.c.b16 %v1087, %v1079
    %v1352 = vpack.c.b16 %v1088, %v1080
    %v1353 = vpack.c.b16 %v1089, %v1081
    %v1354 = vpack.c.b16 %v1090, %v1082
    %v1355 = vpack.c.b16 %v1091, %v1083
    %v1356 = vpack.c.b16 %v1092, %v1084
    %v1357 = vpack.c.b16 %v1101, %v1093
    %v1358 = vpack.c.b16 %v1102, %v1094
    %v1359 = vpack.c.b16 %v1103, %v1095
    %v1360 = vpack.c.b16 %v1104, %v1096
    %v1361 = vpack.c.b16 %v1105, %v1097
    %v1362 = vpack.c.b16 %v1106, %v1098
    %v1363 = vpack.c.b16 %v1107, %v1099
    %v1364 = vpack.c.b16 %v1108, %v1100
    %1621 = vmatprep.subr.bf16.mxu0 %v1110
    %1622 = vmatpush1.bf16.msra.mxu0 %v1109
    %1623 = vmatprep.subr.bf16.mxu0 %v1118
    %1624 = vmatpush1.bf16.msra.mxu0 %v1117
    %1625 = vmatprep.subr.bf16.mxu0 %v1126
    %1626 = vmatpush1.bf16.msra.mxu0 %v1125
    %1627 = vmatprep.subr.bf16.mxu0 %v1134
    %1628 = vmatpush1.bf16.msra.mxu0 %v1133
    %1629 = vmatprep.subr.bf16.mxu0 %v1142
    %1630 = vmatpush1.bf16.msra.mxu0 %v1141
    %1631 = vmatprep.subr.bf16.mxu0 %v1150
    %1632 = vmatpush1.bf16.msra.mxu0 %v1149
    %1633 = vmatprep.subr.bf16.mxu0 %v1158
    %1634 = vmatpush1.bf16.msra.mxu0 %v1157
    %1635 = vmatprep.subr.bf16.mxu0 %v1166
    %1636 = vmatpush1.bf16.msra.mxu0 %v1165
    %1637 = vmatprep.subr.bf16.mxu0 %v1174
    %1638 = vmatpush1.bf16.msra.mxu0 %v1173
    %1639 = vmatprep.subr.bf16.mxu0 %v1182
    %1640 = vmatpush1.bf16.msra.mxu0 %v1181
    %1641 = vmatprep.subr.bf16.mxu0 %v1190
    %1642 = vmatpush1.bf16.msra.mxu0 %v1189
    %1643 = vmatprep.subr.bf16.mxu0 %v1198
    %1644 = vmatpush1.bf16.msra.mxu0 %v1197
    %1645 = vmatprep.subr.bf16.mxu0 %v1206
    %1646 = vmatpush1.bf16.msra.mxu0 %v1205
    %1647 = vmatprep.subr.bf16.mxu0 %v1214
    %1648 = vmatpush1.bf16.msra.mxu0 %v1213
    %1649 = vmatprep.subr.bf16.mxu0 %v1222
    %1650 = vmatpush1.bf16.msra.mxu0 %v1221
    %1651 = vmatprep.subr.bf16.mxu0 %v1230
    %1652 = vmatpush1.bf16.msra.mxu0 %v1229
    %1653 = vmatprep.mubr.bf16.mxu0 %v40
    %1654 = vmatmul.mubr.bf16.gmra.mrb[0].mxu0 %v39
    %v1655 = vpop.f32.mrb[0].mxu0
    %v1656 = vadd.f32 %v304, %v1655
    %v1657 = vpop.f32.mrb[0].mxu0
    %v1658 = vadd.f32 %v308, %v1657
    %v1659 = vpop.f32.mrb[0].mxu0
    %v1660 = vpop.f32.mrb[0].mxu0
    %1661 = vdwg.mxu0
    %1662 = vmatprep.subr.bf16.mxu0 %v1238
    %1663 = vmatpush1.bf16.msra.mxu0 %v1237
    %1664 = vmatprep.subr.bf16.mxu0 %v1246
    %1665 = vmatpush1.bf16.msra.mxu0 %v1245
    %1666 = vmatprep.subr.bf16.mxu0 %v1254
    %1667 = vmatpush1.bf16.msra.mxu0 %v1253
    %1668 = vmatprep.subr.bf16.mxu0 %v1262
    %1669 = vmatpush1.bf16.msra.mxu0 %v1261
    %1670 = vmatprep.subr.bf16.mxu0 %v1270
    %1671 = vmatpush1.bf16.msra.mxu0 %v1269
    %1672 = vmatprep.subr.bf16.mxu0 %v1278
    %1673 = vmatpush1.bf16.msra.mxu0 %v1277
    %1674 = vmatprep.subr.bf16.mxu0 %v1286
    %1675 = vmatpush1.bf16.msra.mxu0 %v1285
    %1676 = vmatprep.subr.bf16.mxu0 %v1294
    %1677 = vmatpush1.bf16.msra.mxu0 %v1293
    %1678 = vmatprep.subr.bf16.mxu0 %v1302
    %1679 = vmatpush1.bf16.msra.mxu0 %v1301
    %1680 = vmatprep.subr.bf16.mxu0 %v1310
    %1681 = vmatpush1.bf16.msra.mxu0 %v1309
    %1682 = vmatprep.subr.bf16.mxu0 %v1318
    %1683 = vmatpush1.bf16.msra.mxu0 %v1317
    %1684 = vmatprep.subr.bf16.mxu0 %v1326
    %1685 = vmatpush1.bf16.msra.mxu0 %v1325
    %1686 = vmatprep.subr.bf16.mxu0 %v1334
    %1687 = vmatpush1.bf16.msra.mxu0 %v1333
    %1688 = vmatprep.subr.bf16.mxu0 %v1342
    %1689 = vmatpush1.bf16.msra.mxu0 %v1341
    %1690 = vmatprep.subr.bf16.mxu0 %v1350
    %1691 = vmatpush1.bf16.msra.mxu0 %v1349
    %1692 = vmatprep.subr.bf16.mxu0 %v1358
    %1693 = vmatpush1.bf16.msra.mxu0 %v1357
    %1694 = vmatprep.mubr.bf16.mxu0 %v42
    %1695 = vmatmul.mubr.bf16.gmra.mrb[0].mxu0 %v41
    %v1696 = vpop.f32.mrb[0].mxu0
    %v1697 = vadd.f32 %v1656, %v1696
    %v1698 = vpop.f32.mrb[0].mxu0
    %v1699 = vadd.f32 %v1658, %v1698
    %v1700 = vpop.f32.mrb[0].mxu0
    %v1701 = vpop.f32.mrb[0].mxu0
    %1702 = vdwg.mxu0
    %1703 = vmatprep.subr.bf16.mxu0 %v1112
    %1704 = vmatpush1.bf16.msra.mxu0 %v1111
    %1705 = vmatprep.subr.bf16.mxu0 %v1120
    %1706 = vmatpush1.bf16.msra.mxu0 %v1119
    %1707 = vmatprep.subr.bf16.mxu0 %v1128
    %1708 = vmatpush1.bf16.msra.mxu0 %v1127
    %1709 = vmatprep.subr.bf16.mxu0 %v1136
    %1710 = vmatpush1.bf16.msra.mxu0 %v1135
    %1711 = vmatprep.subr.bf16.mxu0 %v1144
    %1712 = vmatpush1.bf16.msra.mxu0 %v1143
    %1713 = vmatprep.subr.bf16.mxu0 %v1152
    %1714 = vmatpush1.bf16.msra.mxu0 %v1151
    %1715 = vmatprep.subr.bf16.mxu0 %v1160
    %1716 = vmatpush1.bf16.msra.mxu0 %v1159
    %1717 = vmatprep.subr.bf16.mxu0 %v1168
    %1718 = vmatpush1.bf16.msra.mxu0 %v1167
    %1719 = vmatprep.subr.bf16.mxu0 %v1176
    %1720 = vmatpush1.bf16.msra.mxu0 %v1175
    %1721 = vmatprep.subr.bf16.mxu0 %v1184
    %1722 = vmatpush1.bf16.msra.mxu0 %v1183
    %1723 = vmatprep.subr.bf16.mxu0 %v1192
    %1724 = vmatpush1.bf16.msra.mxu0 %v1191
    %1725 = vmatprep.subr.bf16.mxu0 %v1200
    %1726 = vmatpush1.bf16.msra.mxu0 %v1199
    %1727 = vmatprep.subr.bf16.mxu0 %v1208
    %1728 = vmatpush1.bf16.msra.mxu0 %v1207
    %1729 = vmatprep.subr.bf16.mxu0 %v1216
    %1730 = vmatpush1.bf16.msra.mxu0 %v1215
    %1731 = vmatprep.subr.bf16.mxu0 %v1224
    %1732 = vmatpush1.bf16.msra.mxu0 %v1223
    %1733 = vmatprep.subr.bf16.mxu0 %v1232
    %1734 = vmatpush1.bf16.msra.mxu0 %v1231
    %1735 = vmatprep.mubr.bf16.mxu0 %v40
    %1736 = vmatmul.mubr.bf16.gmra.mrb[0].mxu0 %v39
    %v1737 = vpop.f32.mrb[0].mxu0
    %v1738 = vadd.f32 %v312, %v1737
    %v1739 = vpop.f32.mrb[0].mxu0
    %v1740 = vadd.f32 %v316, %v1739
    %v1741 = vpop.f32.mrb[0].mxu0
    %v1742 = vpop.f32.mrb[0].mxu0
    %1743 = vdwg.mxu0
    %1744 = vmatprep.subr.bf16.mxu0 %v1240
    %1745 = vmatpush1.bf16.msra.mxu0 %v1239
    %1746 = vmatprep.subr.bf16.mxu0 %v1248
    %1747 = vmatpush1.bf16.msra.mxu0 %v1247
    %1748 = vmatprep.subr.bf16.mxu0 %v1256
    %1749 = vmatpush1.bf16.msra.mxu0 %v1255
    %1750 = vmatprep.subr.bf16.mxu0 %v1264
    %1751 = vmatpush1.bf16.msra.mxu0 %v1263
    %1752 = vmatprep.subr.bf16.mxu0 %v1272
    %1753 = vmatpush1.bf16.msra.mxu0 %v1271
    %1754 = vmatprep.subr.bf16.mxu0 %v1280
    %1755 = vmatpush1.bf16.msra.mxu0 %v1279
    %1756 = vmatprep.subr.bf16.mxu0 %v1288
    %1757 = vmatpush1.bf16.msra.mxu0 %v1287
    %1758 = vmatprep.subr.bf16.mxu0 %v1296
    %1759 = vmatpush1.bf16.msra.mxu0 %v1295
    %1760 = vmatprep.subr.bf16.mxu0 %v1304
    %1761 = vmatpush1.bf16.msra.mxu0 %v1303
    %1762 = vmatprep.subr.bf16.mxu0 %v1312
    %1763 = vmatpush1.bf16.msra.mxu0 %v1311
    %1764 = vmatprep.subr.bf16.mxu0 %v1320
    %1765 = vmatpush1.bf16.msra.mxu0 %v1319
    %1766 = vmatprep.subr.bf16.mxu0 %v1328
    %1767 = vmatpush1.bf16.msra.mxu0 %v1327
    %1768 = vmatprep.subr.bf16.mxu0 %v1336
    %1769 = vmatpush1.bf16.msra.mxu0 %v1335
    %1770 = vmatprep.subr.bf16.mxu0 %v1344
    %1771 = vmatpush1.bf16.msra.mxu0 %v1343
    %1772 = vmatprep.subr.bf16.mxu0 %v1352
    %1773 = vmatpush1.bf16.msra.mxu0 %v1351
    %1774 = vmatprep.subr.bf16.mxu0 %v1360
    %1775 = vmatpush1.bf16.msra.mxu0 %v1359
    %1776 = vmatprep.mubr.bf16.mxu0 %v42
    %1777 = vmatmul.mubr.bf16.gmra.mrb[0].mxu0 %v41
    %v1778 = vpop.f32.mrb[0].mxu0
    %v1779 = vadd.f32 %v1738, %v1778
    %v1780 = vpop.f32.mrb[0].mxu0
    %v1781 = vadd.f32 %v1740, %v1780
    %v1782 = vpop.f32.mrb[0].mxu0
    %v1783 = vpop.f32.mrb[0].mxu0
    %1784 = vdwg.mxu0
    %1785 = vmatprep.subr.bf16.mxu0 %v1114
    %1786 = vmatpush1.bf16.msra.mxu0 %v1113
    %1787 = vmatprep.subr.bf16.mxu0 %v1122
    %1788 = vmatpush1.bf16.msra.mxu0 %v1121
    %1789 = vmatprep.subr.bf16.mxu0 %v1130
    %1790 = vmatpush1.bf16.msra.mxu0 %v1129
    %1791 = vmatprep.subr.bf16.mxu0 %v1138
    %1792 = vmatpush1.bf16.msra.mxu0 %v1137
    %1793 = vmatprep.subr.bf16.mxu0 %v1146
    %1794 = vmatpush1.bf16.msra.mxu0 %v1145
    %1795 = vmatprep.subr.bf16.mxu0 %v1154
    %1796 = vmatpush1.bf16.msra.mxu0 %v1153
    %1797 = vmatprep.subr.bf16.mxu0 %v1162
    %1798 = vmatpush1.bf16.msra.mxu0 %v1161
    %1799 = vmatprep.subr.bf16.mxu0 %v1170
    %1800 = vmatpush1.bf16.msra.mxu0 %v1169
    %1801 = vmatprep.subr.bf16.mxu0 %v1178
    %1802 = vmatpush1.bf16.msra.mxu0 %v1177
    %1803 = vmatprep.subr.bf16.mxu0 %v1186
    %1804 = vmatpush1.bf16.msra.mxu0 %v1185
    %1805 = vmatprep.subr.bf16.mxu0 %v1194
    %1806 = vmatpush1.bf16.msra.mxu0 %v1193
    %1807 = vmatprep.subr.bf16.mxu0 %v1202
    %1808 = vmatpush1.bf16.msra.mxu0 %v1201
    %1809 = vmatprep.subr.bf16.mxu0 %v1210
    %1810 = vmatpush1.bf16.msra.mxu0 %v1209
    %1811 = vmatprep.subr.bf16.mxu0 %v1218
    %1812 = vmatpush1.bf16.msra.mxu0 %v1217
    %1813 = vmatprep.subr.bf16.mxu0 %v1226
    %1814 = vmatpush1.bf16.msra.mxu0 %v1225
    %1815 = vmatprep.subr.bf16.mxu0 %v1234
    %1816 = vmatpush1.bf16.msra.mxu0 %v1233
    %1817 = vmatprep.mubr.bf16.mxu0 %v40
    %1818 = vmatmul.mubr.bf16.gmra.mrb[0].mxu0 %v39
    %v1819 = vpop.f32.mrb[0].mxu0
    %v1820 = vadd.f32 %v320, %v1819
    %v1821 = vpop.f32.mrb[0].mxu0
    %v1822 = vadd.f32 %v324, %v1821
    %v1823 = vpop.f32.mrb[0].mxu0
    %v1824 = vpop.f32.mrb[0].mxu0
    %1825 = vdwg.mxu0
    %1826 = vmatprep.subr.bf16.mxu0 %v1242
    %1827 = vmatpush1.bf16.msra.mxu0 %v1241
    %1828 = vmatprep.subr.bf16.mxu0 %v1250
    %1829 = vmatpush1.bf16.msra.mxu0 %v1249
    %1830 = vmatprep.subr.bf16.mxu0 %v1258
    %1831 = vmatpush1.bf16.msra.mxu0 %v1257
    %1832 = vmatprep.subr.bf16.mxu0 %v1266
    %1833 = vmatpush1.bf16.msra.mxu0 %v1265
    %1834 = vmatprep.subr.bf16.mxu0 %v1274
    %1835 = vmatpush1.bf16.msra.mxu0 %v1273
    %1836 = vmatprep.subr.bf16.mxu0 %v1282
    %1837 = vmatpush1.bf16.msra.mxu0 %v1281
    %1838 = vmatprep.subr.bf16.mxu0 %v1290
    %1839 = vmatpush1.bf16.msra.mxu0 %v1289
    %1840 = vmatprep.subr.bf16.mxu0 %v1298
    %1841 = vmatpush1.bf16.msra.mxu0 %v1297
    %1842 = vmatprep.subr.bf16.mxu0 %v1306
    %1843 = vmatpush1.bf16.msra.mxu0 %v1305
    %1844 = vmatprep.subr.bf16.mxu0 %v1314
    %1845 = vmatpush1.bf16.msra.mxu0 %v1313
    %1846 = vmatprep.subr.bf16.mxu0 %v1322
    %1847 = vmatpush1.bf16.msra.mxu0 %v1321
    %1848 = vmatprep.subr.bf16.mxu0 %v1330
    %1849 = vmatpush1.bf16.msra.mxu0 %v1329
    %1850 = vmatprep.subr.bf16.mxu0 %v1338
    %1851 = vmatpush1.bf16.msra.mxu0 %v1337
    %1852 = vmatprep.subr.bf16.mxu0 %v1346
    %1853 = vmatpush1.bf16.msra.mxu0 %v1345
    %1854 = vmatprep.subr.bf16.mxu0 %v1354
    %1855 = vmatpush1.bf16.msra.mxu0 %v1353
    %1856 = vmatprep.subr.bf16.mxu0 %v1362
    %1857 = vmatpush1.bf16.msra.mxu0 %v1361
    %1858 = vmatprep.mubr.bf16.mxu0 %v42
    %1859 = vmatmul.mubr.bf16.gmra.mrb[0].mxu0 %v41
    %v1860 = vpop.f32.mrb[0].mxu0
    %v1861 = vadd.f32 %v1820, %v1860
    %v1862 = vpop.f32.mrb[0].mxu0
    %v1863 = vadd.f32 %v1822, %v1862
    %v1864 = vpop.f32.mrb[0].mxu0
    %v1865 = vpop.f32.mrb[0].mxu0
    %1866 = vdwg.mxu0
    %1867 = vmatprep.subr.bf16.mxu0 %v1116
    %1868 = vmatpush1.bf16.msra.mxu0 %v1115
    %1869 = vmatprep.subr.bf16.mxu0 %v1124
    %1870 = vmatpush1.bf16.msra.mxu0 %v1123
    %1871 = vmatprep.subr.bf16.mxu0 %v1132
    %1872 = vmatpush1.bf16.msra.mxu0 %v1131
    %1873 = vmatprep.subr.bf16.mxu0 %v1140
    %1874 = vmatpush1.bf16.msra.mxu0 %v1139
    %1875 = vmatprep.subr.bf16.mxu0 %v1148
    %1876 = vmatpush1.bf16.msra.mxu0 %v1147
    %1877 = vmatprep.subr.bf16.mxu0 %v1156
    %1878 = vmatpush1.bf16.msra.mxu0 %v1155
    %1879 = vmatprep.subr.bf16.mxu0 %v1164
    %1880 = vmatpush1.bf16.msra.mxu0 %v1163
    %1881 = vmatprep.subr.bf16.mxu0 %v1172
    %1882 = vmatpush1.bf16.msra.mxu0 %v1171
    %1883 = vmatprep.subr.bf16.mxu0 %v1180
    %1884 = vmatpush1.bf16.msra.mxu0 %v1179
    %1885 = vmatprep.subr.bf16.mxu0 %v1188
    %1886 = vmatpush1.bf16.msra.mxu0 %v1187
    %1887 = vmatprep.subr.bf16.mxu0 %v1196
    %1888 = vmatpush1.bf16.msra.mxu0 %v1195
    %1889 = vmatprep.subr.bf16.mxu0 %v1204
    %1890 = vmatpush1.bf16.msra.mxu0 %v1203
    %1891 = vmatprep.subr.bf16.mxu0 %v1212
    %1892 = vmatpush1.bf16.msra.mxu0 %v1211
    %1893 = vmatprep.subr.bf16.mxu0 %v1220
    %1894 = vmatpush1.bf16.msra.mxu0 %v1219
    %1895 = vmatprep.subr.bf16.mxu0 %v1228
    %1896 = vmatpush1.bf16.msra.mxu0 %v1227
    %1897 = vmatprep.subr.bf16.mxu0 %v1236
    %1898 = vmatpush1.bf16.msra.mxu0 %v1235
    %1899 = vmatprep.mubr.bf16.mxu0 %v40
    %1900 = vmatmul.mubr.bf16.gmra.mrb[0].mxu0 %v39
    %v1901 = vpop.f32.mrb[0].mxu0
    %v1902 = vadd.f32 %v328, %v1901
    %v1903 = vpop.f32.mrb[0].mxu0
    %v1904 = vadd.f32 %v332, %v1903
    %v1905 = vpop.f32.mrb[0].mxu0
    %v1906 = vpop.f32.mrb[0].mxu0
    %1907 = vdwg.mxu0
    %1908 = vmatprep.subr.bf16.mxu0 %v1244
    %1909 = vmatpush1.bf16.msra.mxu0 %v1243
    %1910 = vmatprep.subr.bf16.mxu0 %v1252
    %1911 = vmatpush1.bf16.msra.mxu0 %v1251
    %1912 = vmatprep.subr.bf16.mxu0 %v1260
    %1913 = vmatpush1.bf16.msra.mxu0 %v1259
    %1914 = vmatprep.subr.bf16.mxu0 %v1268
    %1915 = vmatpush1.bf16.msra.mxu0 %v1267
    %1916 = vmatprep.subr.bf16.mxu0 %v1276
    %1917 = vmatpush1.bf16.msra.mxu0 %v1275
    %1918 = vmatprep.subr.bf16.mxu0 %v1284
    %1919 = vmatpush1.bf16.msra.mxu0 %v1283
    %1920 = vmatprep.subr.bf16.mxu0 %v1292
    %1921 = vmatpush1.bf16.msra.mxu0 %v1291
    %1922 = vmatprep.subr.bf16.mxu0 %v1300
    %1923 = vmatpush1.bf16.msra.mxu0 %v1299
    %1924 = vmatprep.subr.bf16.mxu0 %v1308
    %1925 = vmatpush1.bf16.msra.mxu0 %v1307
    %1926 = vmatprep.subr.bf16.mxu0 %v1316
    %1927 = vmatpush1.bf16.msra.mxu0 %v1315
    %1928 = vmatprep.subr.bf16.mxu0 %v1324
    %1929 = vmatpush1.bf16.msra.mxu0 %v1323
    %1930 = vmatprep.subr.bf16.mxu0 %v1332
    %1931 = vmatpush1.bf16.msra.mxu0 %v1331
    %1932 = vmatprep.subr.bf16.mxu0 %v1340
    %1933 = vmatpush1.bf16.msra.mxu0 %v1339
    %1934 = vmatprep.subr.bf16.mxu0 %v1348
    %1935 = vmatpush1.bf16.msra.mxu0 %v1347
    %1936 = vmatprep.subr.bf16.mxu0 %v1356
    %1937 = vmatpush1.bf16.msra.mxu0 %v1355
    %1938 = vmatprep.subr.bf16.mxu0 %v1364
    %1939 = vmatpush1.bf16.msra.mxu0 %v1363
    %1940 = vmatprep.mubr.bf16.mxu0 %v42
    %1941 = vmatmul.mubr.bf16.gmra.mrb[0].mxu0 %v41
    %v1942 = vpop.f32.mrb[0].mxu0
    %v1943 = vadd.f32 %v1902, %v1942
    %v1944 = vpop.f32.mrb[0].mxu0
    %v1945 = vadd.f32 %v1904, %v1944
    %v1946 = vpop.f32.mrb[0].mxu0
    %v1947 = vpop.f32.mrb[0].mxu0
    %1948 = vdwg.mxu0
    %v1949 = vmax.f32 %v1697, 0.0
    %v1950 = vmax.f32 %v1699, 0.0
    %v1951 = vmax.f32 %v1779, 0.0
    %v1952 = vmax.f32 %v1781, 0.0
    %v1953 = vmax.f32 %v1861, 0.0
    %v1954 = vmax.f32 %v1863, 0.0
    %v1955 = vmax.f32 %v1943, 0.0
    %v1956 = vmax.f32 %v1945, 0.0
    %v1957 = vpack.c.bf16 %v1949, %v1949
    %v1958 = vpack.c.bf16 %v1950, %v1950
    %v1959 = vpack.c.bf16 %v1951, %v1951
    %v1960 = vpack.c.bf16 %v1952, %v1952
    %v1961 = vpack.c.bf16 %v1953, %v1953
    %v1962 = vpack.c.bf16 %v1954, %v1954
    %v1963 = vpack.c.bf16 %v1955, %v1955
    %v1964 = vpack.c.bf16 %v1956, %v1956
    %v1965 = vld [vmem:[%s3] sm:$0xf]
    %v1966 = vld [vmem:[%s3 + $0x4] sm:$0xf]
    %v1967 = vld [vmem:[%s3 + $0x8] sm:$0xf]
    %v1968 = vld [vmem:[%s3 + $0xc] sm:$0xf]
    %v1969 = vld [vmem:[%s3 + $0x10] sm:$0xf]
    %v1970 = vld [vmem:[%s3 + $0x14] sm:$0xf]
    %v1971 = vld [vmem:[%s3 + $0x18] sm:$0xf]
    %v1972 = vld [vmem:[%s3 + $0x1c] sm:$0xf]
    %v1973 = vld [vmem:[%s3 + $0x20] sm:$0xf]
    %v1974 = vld [vmem:[%s3 + $0x24] sm:$0xf]
    %v1975 = vld [vmem:[%s3 + $0x28] sm:$0xf]
    %v1976 = vld [vmem:[%s3 + $0x2c] sm:$0xf]
    %v1977 = vld [vmem:[%s3 + $0x30] sm:$0xf]
    %v1978 = vld [vmem:[%s3 + $0x34] sm:$0xf]
    %v1979 = vld [vmem:[%s3 + $0x38] sm:$0xf]
    %v1980 = vld [vmem:[%s3 + $0x3c] sm:$0xf]
    %v1981 = vld [vmem:[%s3 + $0x40] sm:$0xf]
    %v1982 = vld [vmem:[%s3 + $0x44] sm:$0xf]
    %v1983 = vld [vmem:[%s3 + $0x48] sm:$0xf]
    %v1984 = vld [vmem:[%s3 + $0x4c] sm:$0xf]
    %v1985 = vld [vmem:[%s3 + $0x50] sm:$0xf]
    %v1986 = vld [vmem:[%s3 + $0x54] sm:$0xf]
    %v1987 = vld [vmem:[%s3 + $0x58] sm:$0xf]
    %v1988 = vld [vmem:[%s3 + $0x5c] sm:$0xf]
    %v1989 = vld [vmem:[%s3 + $0x60] sm:$0xf]
    %v1990 = vld [vmem:[%s3 + $0x64] sm:$0xf]
    %v1991 = vld [vmem:[%s3 + $0x68] sm:$0xf]
    %v1992 = vld [vmem:[%s3 + $0x6c] sm:$0xf]
    %v1993 = vld [vmem:[%s3 + $0x70] sm:$0xf]
    %v1994 = vld [vmem:[%s3 + $0x74] sm:$0xf]
    %v1995 = vld [vmem:[%s3 + $0x78] sm:$0xf]
    %v1996 = vld [vmem:[%s3 + $0x7c] sm:$0xf]
    %v2029 = vunpack.c.l.b16 %v1965
    %v2030 = vunpack.c.l.b16 %v1966
    %v2031 = vunpack.c.l.b16 %v1967
    %v2032 = vunpack.c.l.b16 %v1968
    %v2033 = vunpack.c.l.b16 %v1969
    %v2034 = vunpack.c.l.b16 %v1970
    %v2035 = vunpack.c.l.b16 %v1971
    %v2036 = vunpack.c.l.b16 %v1972
    %v2037 = vunpack.c.l.b16 %v1973
    %v2038 = vunpack.c.l.b16 %v1974
    %v2039 = vunpack.c.l.b16 %v1975
    %v2040 = vunpack.c.l.b16 %v1976
    %v2041 = vunpack.c.l.b16 %v1977
    %v2042 = vunpack.c.l.b16 %v1978
    %v2043 = vunpack.c.l.b16 %v1979
    %v2044 = vunpack.c.l.b16 %v1980
    %v2045 = vunpack.c.l.b16 %v1981
    %v2046 = vunpack.c.l.b16 %v1982
    %v2047 = vunpack.c.l.b16 %v1983
    %v2048 = vunpack.c.l.b16 %v1984
    %v2049 = vunpack.c.l.b16 %v1985
    %v2050 = vunpack.c.l.b16 %v1986
    %v2051 = vunpack.c.l.b16 %v1987
    %v2052 = vunpack.c.l.b16 %v1988
    %v2053 = vunpack.c.l.b16 %v1989
    %v2054 = vunpack.c.l.b16 %v1990
    %v2055 = vunpack.c.l.b16 %v1991
    %v2056 = vunpack.c.l.b16 %v1992
    %v2057 = vunpack.c.l.b16 %v1993
    %v2058 = vunpack.c.l.b16 %v1994
    %v2059 = vunpack.c.l.b16 %v1995
    %v2060 = vunpack.c.l.b16 %v1996
    %v2061 = vpack.c.b16 %v2030, %v2029
    %v2062 = vpack.c.b16 %v2032, %v2031
    %v2063 = vpack.c.b16 %v2034, %v2033
    %v2064 = vpack.c.b16 %v2036, %v2035
    %v2065 = vpack.c.b16 %v2038, %v2037
    %v2066 = vpack.c.b16 %v2040, %v2039
    %v2067 = vpack.c.b16 %v2042, %v2041
    %v2068 = vpack.c.b16 %v2044, %v2043
    %v2069 = vpack.c.b16 %v2046, %v2045
    %v2070 = vpack.c.b16 %v2048, %v2047
    %v2071 = vpack.c.b16 %v2050, %v2049
    %v2072 = vpack.c.b16 %v2052, %v2051
    %v2073 = vpack.c.b16 %v2054, %v2053
    %v2074 = vpack.c.b16 %v2056, %v2055
    %v2075 = vpack.c.b16 %v2058, %v2057
    %v2076 = vpack.c.b16 %v2060, %v2059
    %2093 = vmatprep.subr.bf16.mxu0 0
    %2094 = vmatpush1.bf16.msra.mxu0 %v2061
    %2095 = vmatprep.subr.bf16.mxu0 0
    %2096 = vmatpush1.bf16.msra.mxu0 %v2062
    %2097 = vmatprep.subr.bf16.mxu0 0
    %2098 = vmatpush1.bf16.msra.mxu0 %v2063
    %2099 = vmatprep.subr.bf16.mxu0 0
    %2100 = vmatpush1.bf16.msra.mxu0 %v2064
    %2101 = vmatprep.subr.bf16.mxu0 0
    %2102 = vmatpush1.bf16.msra.mxu0 %v2065
    %2103 = vmatprep.subr.bf16.mxu0 0
    %2104 = vmatpush1.bf16.msra.mxu0 %v2066
    %2105 = vmatprep.subr.bf16.mxu0 0
    %2106 = vmatpush1.bf16.msra.mxu0 %v2067
    %2107 = vmatprep.subr.bf16.mxu0 0
    %2108 = vmatpush1.bf16.msra.mxu0 %v2068
    %2109 = vmatprep.subr.bf16.mxu0 0
    %2110 = vmatpush1.bf16.msra.mxu0 %v2069
    %2111 = vmatprep.subr.bf16.mxu0 0
    %2112 = vmatpush1.bf16.msra.mxu0 %v2070
    %2113 = vmatprep.subr.bf16.mxu0 0
    %2114 = vmatpush1.bf16.msra.mxu0 %v2071
    %2115 = vmatprep.subr.bf16.mxu0 0
    %2116 = vmatpush1.bf16.msra.mxu0 %v2072
    %2117 = vmatprep.subr.bf16.mxu0 0
    %2118 = vmatpush1.bf16.msra.mxu0 %v2073
    %2119 = vmatprep.subr.bf16.mxu0 0
    %2120 = vmatpush1.bf16.msra.mxu0 %v2074
    %2121 = vmatprep.subr.bf16.mxu0 0
    %2122 = vmatpush1.bf16.msra.mxu0 %v2075
    %2123 = vmatprep.subr.bf16.mxu0 0
    %2124 = vmatpush1.bf16.msra.mxu0 %v2076
    %2125 = vmatprep.mubr.bf16.mxu0 %v1958
    %2126 = vmatmul.mubr.bf16.gmra.mrb[0].mxu0 %v1957
    %v2127 = vpop.f32.mrb[0].mxu0
    %v2128 = vadd.f32 0.0, %v2127
    %v2129 = vpop.f32.mrb[0].mxu0
    %v2130 = vpop.f32.mrb[0].mxu0
    %v2131 = vpop.f32.mrb[0].mxu0
    %2132 = vdwg.mxu0
    %s2133 = scalar_lea.vmem %s3, 128
    %v2134 = vld [vmem:[%s2133] sm:$0xf]
    %v2135 = vld [vmem:[%s2133 + $0x4] sm:$0xf]
    %v2136 = vld [vmem:[%s2133 + $0x8] sm:$0xf]
    %v2137 = vld [vmem:[%s2133 + $0xc] sm:$0xf]
    %v2138 = vld [vmem:[%s2133 + $0x10] sm:$0xf]
    %v2139 = vld [vmem:[%s2133 + $0x14] sm:$0xf]
    %v2140 = vld [vmem:[%s2133 + $0x18] sm:$0xf]
    %v2141 = vld [vmem:[%s2133 + $0x1c] sm:$0xf]
    %v2142 = vld [vmem:[%s2133 + $0x20] sm:$0xf]
    %v2143 = vld [vmem:[%s2133 + $0x24] sm:$0xf]
    %v2144 = vld [vmem:[%s2133 + $0x28] sm:$0xf]
    %v2145 = vld [vmem:[%s2133 + $0x2c] sm:$0xf]
    %v2146 = vld [vmem:[%s2133 + $0x30] sm:$0xf]
    %v2147 = vld [vmem:[%s2133 + $0x34] sm:$0xf]
    %v2148 = vld [vmem:[%s2133 + $0x38] sm:$0xf]
    %v2149 = vld [vmem:[%s2133 + $0x3c] sm:$0xf]
    %v2150 = vld [vmem:[%s2133 + $0x40] sm:$0xf]
    %v2151 = vld [vmem:[%s2133 + $0x44] sm:$0xf]
    %v2152 = vld [vmem:[%s2133 + $0x48] sm:$0xf]
    %v2153 = vld [vmem:[%s2133 + $0x4c] sm:$0xf]
    %v2154 = vld [vmem:[%s2133 + $0x50] sm:$0xf]
    %v2155 = vld [vmem:[%s2133 + $0x54] sm:$0xf]
    %v2156 = vld [vmem:[%s2133 + $0x58] sm:$0xf]
    %v2157 = vld [vmem:[%s2133 + $0x5c] sm:$0xf]
    %v2158 = vld [vmem:[%s2133 + $0x60] sm:$0xf]
    %v2159 = vld [vmem:[%s2133 + $0x64] sm:$0xf]
    %v2160 = vld [vmem:[%s2133 + $0x68] sm:$0xf]
    %v2161 = vld [vmem:[%s2133 + $0x6c] sm:$0xf]
    %v2162 = vld [vmem:[%s2133 + $0x70] sm:$0xf]
    %v2163 = vld [vmem:[%s2133 + $0x74] sm:$0xf]
    %v2164 = vld [vmem:[%s2133 + $0x78] sm:$0xf]
    %v2165 = vld [vmem:[%s2133 + $0x7c] sm:$0xf]
    %v2198 = vunpack.c.l.b16 %v2134
    %v2199 = vunpack.c.l.b16 %v2135
    %v2200 = vunpack.c.l.b16 %v2136
    %v2201 = vunpack.c.l.b16 %v2137
    %v2202 = vunpack.c.l.b16 %v2138
    %v2203 = vunpack.c.l.b16 %v2139
    %v2204 = vunpack.c.l.b16 %v2140
    %v2205 = vunpack.c.l.b16 %v2141
    %v2206 = vunpack.c.l.b16 %v2142
    %v2207 = vunpack.c.l.b16 %v2143
    %v2208 = vunpack.c.l.b16 %v2144
    %v2209 = vunpack.c.l.b16 %v2145
    %v2210 = vunpack.c.l.b16 %v2146
    %v2211 = vunpack.c.l.b16 %v2147
    %v2212 = vunpack.c.l.b16 %v2148
    %v2213 = vunpack.c.l.b16 %v2149
    %v2214 = vunpack.c.l.b16 %v2150
    %v2215 = vunpack.c.l.b16 %v2151
    %v2216 = vunpack.c.l.b16 %v2152
    %v2217 = vunpack.c.l.b16 %v2153
    %v2218 = vunpack.c.l.b16 %v2154
    %v2219 = vunpack.c.l.b16 %v2155
    %v2220 = vunpack.c.l.b16 %v2156
    %v2221 = vunpack.c.l.b16 %v2157
    %v2222 = vunpack.c.l.b16 %v2158
    %v2223 = vunpack.c.l.b16 %v2159
    %v2224 = vunpack.c.l.b16 %v2160
    %v2225 = vunpack.c.l.b16 %v2161
    %v2226 = vunpack.c.l.b16 %v2162
    %v2227 = vunpack.c.l.b16 %v2163
    %v2228 = vunpack.c.l.b16 %v2164
    %v2229 = vunpack.c.l.b16 %v2165
    %v2230 = vpack.c.b16 %v2199, %v2198
    %v2231 = vpack.c.b16 %v2201, %v2200
    %v2232 = vpack.c.b16 %v2203, %v2202
    %v2233 = vpack.c.b16 %v2205, %v2204
    %v2234 = vpack.c.b16 %v2207, %v2206
    %v2235 = vpack.c.b16 %v2209, %v2208
    %v2236 = vpack.c.b16 %v2211, %v2210
    %v2237 = vpack.c.b16 %v2213, %v2212
    %v2238 = vpack.c.b16 %v2215, %v2214
    %v2239 = vpack.c.b16 %v2217, %v2216
    %v2240 = vpack.c.b16 %v2219, %v2218
    %v2241 = vpack.c.b16 %v2221, %v2220
    %v2242 = vpack.c.b16 %v2223, %v2222
    %v2243 = vpack.c.b16 %v2225, %v2224
    %v2244 = vpack.c.b16 %v2227, %v2226
    %v2245 = vpack.c.b16 %v2229, %v2228
    %2262 = vmatprep.subr.bf16.mxu0 0
    %2263 = vmatpush1.bf16.msra.mxu0 %v2230
    %2264 = vmatprep.subr.bf16.mxu0 0
    %2265 = vmatpush1.bf16.msra.mxu0 %v2231
    %2266 = vmatprep.subr.bf16.mxu0 0
    %2267 = vmatpush1.bf16.msra.mxu0 %v2232
    %2268 = vmatprep.subr.bf16.mxu0 0
    %2269 = vmatpush1.bf16.msra.mxu0 %v2233
    %2270 = vmatprep.subr.bf16.mxu0 0
    %2271 = vmatpush1.bf16.msra.mxu0 %v2234
    %2272 = vmatprep.subr.bf16.mxu0 0
    %2273 = vmatpush1.bf16.msra.mxu0 %v2235
    %2274 = vmatprep.subr.bf16.mxu0 0
    %2275 = vmatpush1.bf16.msra.mxu0 %v2236
    %2276 = vmatprep.subr.bf16.mxu0 0
    %2277 = vmatpush1.bf16.msra.mxu0 %v2237
    %2278 = vmatprep.subr.bf16.mxu0 0
    %2279 = vmatpush1.bf16.msra.mxu0 %v2238
    %2280 = vmatprep.subr.bf16.mxu0 0
    %2281 = vmatpush1.bf16.msra.mxu0 %v2239
    %2282 = vmatprep.subr.bf16.mxu0 0
    %2283 = vmatpush1.bf16.msra.mxu0 %v2240
    %2284 = vmatprep.subr.bf16.mxu0 0
    %2285 = vmatpush1.bf16.msra.mxu0 %v2241
    %2286 = vmatprep.subr.bf16.mxu0 0
    %2287 = vmatpush1.bf16.msra.mxu0 %v2242
    %2288 = vmatprep.subr.bf16.mxu0 0
    %2289 = vmatpush1.bf16.msra.mxu0 %v2243
    %2290 = vmatprep.subr.bf16.mxu0 0
    %2291 = vmatpush1.bf16.msra.mxu0 %v2244
    %2292 = vmatprep.subr.bf16.mxu0 0
    %2293 = vmatpush1.bf16.msra.mxu0 %v2245
    %2294 = vmatprep.mubr.bf16.mxu0 %v1960
    %2295 = vmatmul.mubr.bf16.gmra.mrb[0].mxu0 %v1959
    %v2296 = vpop.f32.mrb[0].mxu0
    %v2297 = vadd.f32 0.0, %v2296
    %v2298 = vpop.f32.mrb[0].mxu0
    %v2299 = vpop.f32.mrb[0].mxu0
    %v2300 = vpop.f32.mrb[0].mxu0
    %2301 = vdwg.mxu0
    %s2302 = scalar_lea.vmem %s3, 256
    %v2303 = vld [vmem:[%s2302] sm:$0xf]
    %v2304 = vld [vmem:[%s2302 + $0x4] sm:$0xf]
    %v2305 = vld [vmem:[%s2302 + $0x8] sm:$0xf]
    %v2306 = vld [vmem:[%s2302 + $0xc] sm:$0xf]
    %v2307 = vld [vmem:[%s2302 + $0x10] sm:$0xf]
    %v2308 = vld [vmem:[%s2302 + $0x14] sm:$0xf]
    %v2309 = vld [vmem:[%s2302 + $0x18] sm:$0xf]
    %v2310 = vld [vmem:[%s2302 + $0x1c] sm:$0xf]
    %v2311 = vld [vmem:[%s2302 + $0x20] sm:$0xf]
    %v2312 = vld [vmem:[%s2302 + $0x24] sm:$0xf]
    %v2313 = vld [vmem:[%s2302 + $0x28] sm:$0xf]
    %v2314 = vld [vmem:[%s2302 + $0x2c] sm:$0xf]
    %v2315 = vld [vmem:[%s2302 + $0x30] sm:$0xf]
    %v2316 = vld [vmem:[%s2302 + $0x34] sm:$0xf]
    %v2317 = vld [vmem:[%s2302 + $0x38] sm:$0xf]
    %v2318 = vld [vmem:[%s2302 + $0x3c] sm:$0xf]
    %v2319 = vld [vmem:[%s2302 + $0x40] sm:$0xf]
    %v2320 = vld [vmem:[%s2302 + $0x44] sm:$0xf]
    %v2321 = vld [vmem:[%s2302 + $0x48] sm:$0xf]
    %v2322 = vld [vmem:[%s2302 + $0x4c] sm:$0xf]
    %v2323 = vld [vmem:[%s2302 + $0x50] sm:$0xf]
    %v2324 = vld [vmem:[%s2302 + $0x54] sm:$0xf]
    %v2325 = vld [vmem:[%s2302 + $0x58] sm:$0xf]
    %v2326 = vld [vmem:[%s2302 + $0x5c] sm:$0xf]
    %v2327 = vld [vmem:[%s2302 + $0x60] sm:$0xf]
    %v2328 = vld [vmem:[%s2302 + $0x64] sm:$0xf]
    %v2329 = vld [vmem:[%s2302 + $0x68] sm:$0xf]
    %v2330 = vld [vmem:[%s2302 + $0x6c] sm:$0xf]
    %v2331 = vld [vmem:[%s2302 + $0x70] sm:$0xf]
    %v2332 = vld [vmem:[%s2302 + $0x74] sm:$0xf]
    %v2333 = vld [vmem:[%s2302 + $0x78] sm:$0xf]
    %v2334 = vld [vmem:[%s2302 + $0x7c] sm:$0xf]
    %v2367 = vunpack.c.l.b16 %v2303
    %v2368 = vunpack.c.l.b16 %v2304
    %v2369 = vunpack.c.l.b16 %v2305
    %v2370 = vunpack.c.l.b16 %v2306
    %v2371 = vunpack.c.l.b16 %v2307
    %v2372 = vunpack.c.l.b16 %v2308
    %v2373 = vunpack.c.l.b16 %v2309
    %v2374 = vunpack.c.l.b16 %v2310
    %v2375 = vunpack.c.l.b16 %v2311
    %v2376 = vunpack.c.l.b16 %v2312
    %v2377 = vunpack.c.l.b16 %v2313
    %v2378 = vunpack.c.l.b16 %v2314
    %v2379 = vunpack.c.l.b16 %v2315
    %v2380 = vunpack.c.l.b16 %v2316
    %v2381 = vunpack.c.l.b16 %v2317
    %v2382 = vunpack.c.l.b16 %v2318
    %v2383 = vunpack.c.l.b16 %v2319
    %v2384 = vunpack.c.l.b16 %v2320
    %v2385 = vunpack.c.l.b16 %v2321
    %v2386 = vunpack.c.l.b16 %v2322
    %v2387 = vunpack.c.l.b16 %v2323
    %v2388 = vunpack.c.l.b16 %v2324
    %v2389 = vunpack.c.l.b16 %v2325
    %v2390 = vunpack.c.l.b16 %v2326
    %v2391 = vunpack.c.l.b16 %v2327
    %v2392 = vunpack.c.l.b16 %v2328
    %v2393 = vunpack.c.l.b16 %v2329
    %v2394 = vunpack.c.l.b16 %v2330
    %v2395 = vunpack.c.l.b16 %v2331
    %v2396 = vunpack.c.l.b16 %v2332
    %v2397 = vunpack.c.l.b16 %v2333
    %v2398 = vunpack.c.l.b16 %v2334
    %v2399 = vpack.c.b16 %v2368, %v2367
    %v2400 = vpack.c.b16 %v2370, %v2369
    %v2401 = vpack.c.b16 %v2372, %v2371
    %v2402 = vpack.c.b16 %v2374, %v2373
    %v2403 = vpack.c.b16 %v2376, %v2375
    %v2404 = vpack.c.b16 %v2378, %v2377
    %v2405 = vpack.c.b16 %v2380, %v2379
    %v2406 = vpack.c.b16 %v2382, %v2381
    %v2407 = vpack.c.b16 %v2384, %v2383
    %v2408 = vpack.c.b16 %v2386, %v2385
    %v2409 = vpack.c.b16 %v2388, %v2387
    %v2410 = vpack.c.b16 %v2390, %v2389
    %v2411 = vpack.c.b16 %v2392, %v2391
    %v2412 = vpack.c.b16 %v2394, %v2393
    %v2413 = vpack.c.b16 %v2396, %v2395
    %v2414 = vpack.c.b16 %v2398, %v2397
    %2431 = vmatprep.subr.bf16.mxu0 0
    %2432 = vmatpush1.bf16.msra.mxu0 %v2399
    %2433 = vmatprep.subr.bf16.mxu0 0
    %2434 = vmatpush1.bf16.msra.mxu0 %v2400
    %2435 = vmatprep.subr.bf16.mxu0 0
    %2436 = vmatpush1.bf16.msra.mxu0 %v2401
    %2437 = vmatprep.subr.bf16.mxu0 0
    %2438 = vmatpush1.bf16.msra.mxu0 %v2402
    %2439 = vmatprep.subr.bf16.mxu0 0
    %2440 = vmatpush1.bf16.msra.mxu0 %v2403
    %2441 = vmatprep.subr.bf16.mxu0 0
    %2442 = vmatpush1.bf16.msra.mxu0 %v2404
    %2443 = vmatprep.subr.bf16.mxu0 0
    %2444 = vmatpush1.bf16.msra.mxu0 %v2405
    %2445 = vmatprep.subr.bf16.mxu0 0
    %2446 = vmatpush1.bf16.msra.mxu0 %v2406
    %2447 = vmatprep.subr.bf16.mxu0 0
    %2448 = vmatpush1.bf16.msra.mxu0 %v2407
    %2449 = vmatprep.subr.bf16.mxu0 0
    %2450 = vmatpush1.bf16.msra.mxu0 %v2408
    %2451 = vmatprep.subr.bf16.mxu0 0
    %2452 = vmatpush1.bf16.msra.mxu0 %v2409
    %2453 = vmatprep.subr.bf16.mxu0 0
    %2454 = vmatpush1.bf16.msra.mxu0 %v2410
    %2455 = vmatprep.subr.bf16.mxu0 0
    %2456 = vmatpush1.bf16.msra.mxu0 %v2411
    %2457 = vmatprep.subr.bf16.mxu0 0
    %2458 = vmatpush1.bf16.msra.mxu0 %v2412
    %2459 = vmatprep.subr.bf16.mxu0 0
    %2460 = vmatpush1.bf16.msra.mxu0 %v2413
    %2461 = vmatprep.subr.bf16.mxu0 0
    %2462 = vmatpush1.bf16.msra.mxu0 %v2414
    %2463 = vmatprep.mubr.bf16.mxu0 %v1962
    %2464 = vmatmul.mubr.bf16.gmra.mrb[0].mxu0 %v1961
    %v2465 = vpop.f32.mrb[0].mxu0
    %v2466 = vadd.f32 0.0, %v2465
    %v2467 = vpop.f32.mrb[0].mxu0
    %v2468 = vpop.f32.mrb[0].mxu0
    %v2469 = vpop.f32.mrb[0].mxu0
    %2470 = vdwg.mxu0
    %s2471 = scalar_lea.vmem %s3, 384
    %v2472 = vld [vmem:[%s2471] sm:$0xf]
    %v2473 = vld [vmem:[%s2471 + $0x4] sm:$0xf]
    %v2474 = vld [vmem:[%s2471 + $0x8] sm:$0xf]
    %v2475 = vld [vmem:[%s2471 + $0xc] sm:$0xf]
    %v2476 = vld [vmem:[%s2471 + $0x10] sm:$0xf]
    %v2477 = vld [vmem:[%s2471 + $0x14] sm:$0xf]
    %v2478 = vld [vmem:[%s2471 + $0x18] sm:$0xf]
    %v2479 = vld [vmem:[%s2471 + $0x1c] sm:$0xf]
    %v2480 = vld [vmem:[%s2471 + $0x20] sm:$0xf]
    %v2481 = vld [vmem:[%s2471 + $0x24] sm:$0xf]
    %v2482 = vld [vmem:[%s2471 + $0x28] sm:$0xf]
    %v2483 = vld [vmem:[%s2471 + $0x2c] sm:$0xf]
    %v2484 = vld [vmem:[%s2471 + $0x30] sm:$0xf]
    %v2485 = vld [vmem:[%s2471 + $0x34] sm:$0xf]
    %v2486 = vld [vmem:[%s2471 + $0x38] sm:$0xf]
    %v2487 = vld [vmem:[%s2471 + $0x3c] sm:$0xf]
    %v2488 = vld [vmem:[%s2471 + $0x40] sm:$0xf]
    %v2489 = vld [vmem:[%s2471 + $0x44] sm:$0xf]
    %v2490 = vld [vmem:[%s2471 + $0x48] sm:$0xf]
    %v2491 = vld [vmem:[%s2471 + $0x4c] sm:$0xf]
    %v2492 = vld [vmem:[%s2471 + $0x50] sm:$0xf]
    %v2493 = vld [vmem:[%s2471 + $0x54] sm:$0xf]
    %v2494 = vld [vmem:[%s2471 + $0x58] sm:$0xf]
    %v2495 = vld [vmem:[%s2471 + $0x5c] sm:$0xf]
    %v2496 = vld [vmem:[%s2471 + $0x60] sm:$0xf]
    %v2497 = vld [vmem:[%s2471 + $0x64] sm:$0xf]
    %v2498 = vld [vmem:[%s2471 + $0x68] sm:$0xf]
    %v2499 = vld [vmem:[%s2471 + $0x6c] sm:$0xf]
    %v2500 = vld [vmem:[%s2471 + $0x70] sm:$0xf]
    %v2501 = vld [vmem:[%s2471 + $0x74] sm:$0xf]
    %v2502 = vld [vmem:[%s2471 + $0x78] sm:$0xf]
    %v2503 = vld [vmem:[%s2471 + $0x7c] sm:$0xf]
    %v2536 = vunpack.c.l.b16 %v2472
    %v2537 = vunpack.c.l.b16 %v2473
    %v2538 = vunpack.c.l.b16 %v2474
    %v2539 = vunpack.c.l.b16 %v2475
    %v2540 = vunpack.c.l.b16 %v2476
    %v2541 = vunpack.c.l.b16 %v2477
    %v2542 = vunpack.c.l.b16 %v2478
    %v2543 = vunpack.c.l.b16 %v2479
    %v2544 = vunpack.c.l.b16 %v2480
    %v2545 = vunpack.c.l.b16 %v2481
    %v2546 = vunpack.c.l.b16 %v2482
    %v2547 = vunpack.c.l.b16 %v2483
    %v2548 = vunpack.c.l.b16 %v2484
    %v2549 = vunpack.c.l.b16 %v2485
    %v2550 = vunpack.c.l.b16 %v2486
    %v2551 = vunpack.c.l.b16 %v2487
    %v2552 = vunpack.c.l.b16 %v2488
    %v2553 = vunpack.c.l.b16 %v2489
    %v2554 = vunpack.c.l.b16 %v2490
    %v2555 = vunpack.c.l.b16 %v2491
    %v2556 = vunpack.c.l.b16 %v2492
    %v2557 = vunpack.c.l.b16 %v2493
    %v2558 = vunpack.c.l.b16 %v2494
    %v2559 = vunpack.c.l.b16 %v2495
    %v2560 = vunpack.c.l.b16 %v2496
    %v2561 = vunpack.c.l.b16 %v2497
    %v2562 = vunpack.c.l.b16 %v2498
    %v2563 = vunpack.c.l.b16 %v2499
    %v2564 = vunpack.c.l.b16 %v2500
    %v2565 = vunpack.c.l.b16 %v2501
    %v2566 = vunpack.c.l.b16 %v2502
    %v2567 = vunpack.c.l.b16 %v2503
    %v2568 = vpack.c.b16 %v2537, %v2536
    %v2569 = vpack.c.b16 %v2539, %v2538
    %v2570 = vpack.c.b16 %v2541, %v2540
    %v2571 = vpack.c.b16 %v2543, %v2542
    %v2572 = vpack.c.b16 %v2545, %v2544
    %v2573 = vpack.c.b16 %v2547, %v2546
    %v2574 = vpack.c.b16 %v2549, %v2548
    %v2575 = vpack.c.b16 %v2551, %v2550
    %v2576 = vpack.c.b16 %v2553, %v2552
    %v2577 = vpack.c.b16 %v2555, %v2554
    %v2578 = vpack.c.b16 %v2557, %v2556
    %v2579 = vpack.c.b16 %v2559, %v2558
    %v2580 = vpack.c.b16 %v2561, %v2560
    %v2581 = vpack.c.b16 %v2563, %v2562
    %v2582 = vpack.c.b16 %v2565, %v2564
    %v2583 = vpack.c.b16 %v2567, %v2566
    %2600 = vmatprep.subr.bf16.mxu0 0
    %2601 = vmatpush1.bf16.msra.mxu0 %v2568
    %2602 = vmatprep.subr.bf16.mxu0 0
    %2603 = vmatpush1.bf16.msra.mxu0 %v2569
    %2604 = vmatprep.subr.bf16.mxu0 0
    %2605 = vmatpush1.bf16.msra.mxu0 %v2570
    %2606 = vmatprep.subr.bf16.mxu0 0
    %2607 = vmatpush1.bf16.msra.mxu0 %v2571
    %2608 = vmatprep.subr.bf16.mxu0 0
    %2609 = vmatpush1.bf16.msra.mxu0 %v2572
    %2610 = vmatprep.subr.bf16.mxu0 0
    %2611 = vmatpush1.bf16.msra.mxu0 %v2573
    %2612 = vmatprep.subr.bf16.mxu0 0
    %2613 = vmatpush1.bf16.msra.mxu0 %v2574
    %2614 = vmatprep.subr.bf16.mxu0 0
    %2615 = vmatpush1.bf16.msra.mxu0 %v2575
    %2616 = vmatprep.subr.bf16.mxu0 0
    %2617 = vmatpush1.bf16.msra.mxu0 %v2576
    %2618 = vmatprep.subr.bf16.mxu0 0
    %2619 = vmatpush1.bf16.msra.mxu0 %v2577
    %2620 = vmatprep.subr.bf16.mxu0 0
    %2621 = vmatpush1.bf16.msra.mxu0 %v2578
    %2622 = vmatprep.subr.bf16.mxu0 0
    %2623 = vmatpush1.bf16.msra.mxu0 %v2579
    %2624 = vmatprep.subr.bf16.mxu0 0
    %2625 = vmatpush1.bf16.msra.mxu0 %v2580
    %2626 = vmatprep.subr.bf16.mxu0 0
    %2627 = vmatpush1.bf16.msra.mxu0 %v2581
    %2628 = vmatprep.subr.bf16.mxu0 0
    %2629 = vmatpush1.bf16.msra.mxu0 %v2582
    %2630 = vmatprep.subr.bf16.mxu0 0
    %2631 = vmatpush1.bf16.msra.mxu0 %v2583
    %2632 = vmatprep.mubr.bf16.mxu0 %v1964
    %2633 = vmatmul.mubr.bf16.gmra.mrb[0].mxu0 %v1963
    %v2634 = vpop.f32.mrb[0].mxu0
    %v2635 = vadd.f32 0.0, %v2634
    %v2636 = vpop.f32.mrb[0].mxu0
    %v2637 = vpop.f32.mrb[0].mxu0
    %v2638 = vpop.f32.mrb[0].mxu0
    %2639 = vdwg.mxu0
    %2641 = vrot.lane.b32.xlu0 %v2297, 32
    %v2642 = vpop.permute.xlu0 %2641
    %2645 = vrot.lane.b32.xlu0 %v2466, 64
    %v2646 = vpop.permute.xlu0 %2645
    %2649 = vrot.lane.b32.xlu0 %v2635, 96
    %v2650 = vpop.permute.xlu0 %2649
    %vm2652 = vcmask 261120
    %v2653 = vsel %vm2652, %v2128, %v2642
    %vm2654 = vcmask 523264
    %v2655 = vsel %vm2654, %v2653, %v2646
    %vm2656 = vcmask 785408
    %v2657 = vsel %vm2656, %v2655, %v2650
    %v2658 = vld [vmem:[%s4] sm:$0x1]
    %v2660 = vlaneseq
    %v2661 = vshrl.u32 %v2660, 7
    %v2662 = vsub.s32 0, %v2661
    %v2663 = vrot.slane %v2658, %v2662
    %v2665 = vadd.f32 %v2657, %v2663
    %2666 = vst [vmem:[%s5] sm:$0xff] %v2665
    // Predicated region
    $region26: #{mtl_classifier_mlp.1} parent=1 // pred_check
      _
    $region27: #{mtl_classifier_mlp.1} parent=1 // pred_check_branch
      %2668 = sbr.rel (0) target = $region29
    $region28: #{mtl_classifier_mlp.1} parent=1 // pred_region
      _
    $region29: #{mtl_classifier_mlp.1} parent=1 // pred_fallthru
      _
    // Predicated region
    $region30: #{mtl_classifier_mlp.1} parent=1 // pred_check
      _
    $region31: #{mtl_classifier_mlp.1} parent=1 // pred_check_branch
      %2670 = sbr.rel (0) target = $region33
    $region32: #{mtl_classifier_mlp.1} parent=1 // pred_region
      _
    $region33: #{mtl_classifier_mlp.1} parent=1 // pred_fallthru
      _
    %2671 = vsyncpa [#allocation3], 1

</llo_original>
